<compile_context>
chip_gen: v5e
topology: v5e:2x2
jax: 0.10.0
libtpu: 0.0.40
codegen_flags: <defaults>
</compile_context>

<pallas_src>
import functools

import jax
import jax.numpy as jnp
from jax import lax
from jax.experimental import pallas as pl
from jax.experimental.pallas import tpu as pltpu

# ---- Cost.__init__ defaults (deterministic, no checkpoint) -------------------
DECAY_FACTOR = 0.97
VEHICLE_WIDTH = 2.1
VEHICLE_LENGTH = 4.9
PIXELS_PER_METER = 5.0
LIGHT_OFFSET_X = 12.0
LIGHT_OFFSET_Y = 3.25
SIDE_FACTOR = 1.1

DX = VEHICLE_WIDTH / 2.0 + 1.0          # lateral half-width for car mask
DX_LIGHT = VEHICLE_WIDTH + 1.0          # lateral half-width for light mask
HALF_LEN = VEHICLE_LENGTH / 2.0         # backward extent of the box masks

_UNROLL_GB = 4                          # static unroll at/below; fori_loop above


# ------------------------------------------------------------------------------
# Glue (plain JAX): rotate_batched-style pose parameters
# ------------------------------------------------------------------------------
def _pose_params(location, yaw, speed):
    """rotate_batched + speed-dependent extents. All outputs shaped (B, T-1)."""
    loc0 = location[:, 0:1, :]                       # (B,1,2)
    yaw0 = yaw[:, 0:1, 0]                            # (B,1)
    dloc = location[:, 1:, :] - loc0                 # (B,T-1,2)
    c0, s0 = jnp.cos(yaw0), jnp.sin(yaw0)
    x = c0 * dloc[..., 0] + s0 * dloc[..., 1]
    y = -s0 * dloc[..., 0] + c0 * dloc[..., 1]
    yaw_ = yaw[:, 1:, 0] - yaw0

    speed_ = speed[:, 1:, 0]                          # (B,T-1)
    dy = speed_ + VEHICLE_LENGTH + 0.25
    dy_light = speed_ * 0.5 + VEHICLE_LENGTH * 3.0

    Tm1 = location.shape[1] - 1
    decay = DECAY_FACTOR ** jnp.arange(Tm1, dtype=jnp.float32)
    decay = jnp.broadcast_to(decay[None, :], x.shape)
    return (x.astype(jnp.float32), y.astype(jnp.float32), yaw_.astype(jnp.float32),
            dy.astype(jnp.float32), dy_light.astype(jnp.float32),
            decay.astype(jnp.float32))


def _coordinate_grid(H, W):
    """Lane-dense (2, S, 128) ego-frame coordinate grid (meters), ego at center."""
    HW = H * W
    S = HW // 128
    p = jnp.arange(HW, dtype=jnp.int32)
    col = (p % W).astype(jnp.float32)
    row = (p // W).astype(jnp.float32)
    X = ((col - W / 2.0) / PIXELS_PER_METER).reshape(S, 128)   # lateral meters
    Y = ((H / 2.0 - row) / PIXELS_PER_METER).reshape(S, 128)   # longitudinal meters
    return jnp.stack([X, Y], axis=0).astype(jnp.float32)


# ------------------------------------------------------------------------------
# Pallas kernel: one grid step per (batch-block, time) pair
# ------------------------------------------------------------------------------
def _cost_kernel(params_ref, coords_ref, bev_ref,
                 mcar_ref, mside_ref, mlight_ref, cost_ref, *, gb, tm1):
    bb = pl.program_id(0)        # batch-block index
    t = pl.program_id(1)         # time index (0 .. T-2)

    X = coords_ref[0]            # (S, 128) lateral meters
    Y = coords_ref[1]            # (S, 128) longitudinal meters
    zero = jnp.zeros_like(X)

    def body(i, carry):
        g = (bb * gb + i) * tm1 + t
        base = g * 8
        px = params_ref[base + 0]
        py = params_ref[base + 1]
        cos_t = params_ref[base + 2]
        sin_t = params_ref[base + 3]
        dy = params_ref[base + 4]
        dy_light = params_ref[base + 5]
        decay = params_ref[base + 6]

        # ego-aligned coordinates; longitudinal test shared by car & side masks
        tx = X - px
        ty = Y - py
        lx = cos_t * tx + sin_t * ty
        ly = -sin_t * tx + cos_t * ty
        long_ok = (ly >= -HALF_LEN) & (ly <= dy)
        abs_lx = jnp.abs(lx)
        in_car = (abs_lx <= DX) & long_ok
        in_side = (abs_lx <= DX * SIDE_FACTOR) & long_ok

        txl = X - (px + LIGHT_OFFSET_X)
        tyl = Y - (py + LIGHT_OFFSET_Y)
        lxl = cos_t * txl + sin_t * tyl
        lyl = -sin_t * txl + cos_t * tyl
        in_light = (jnp.abs(lxl) <= DX_LIGHT) & (lyl >= -HALF_LEN) & (lyl <= dy_light)

        # bf16 mask writeback: 0/1 is exact, halves mask HBM write traffic.
        mcar_ref[i] = in_car.astype(jnp.bfloat16)
        mside_ref[i] = in_side.astype(jnp.bfloat16)
        mlight_ref[i] = in_light.astype(jnp.bfloat16)

        # pre-decayed masks: one select per mask instead of (& mask + select)/channel
        dec_car = jnp.where(in_car, decay, zero)
        dec_side = jnp.where(in_side, decay, zero)
        dec_light = jnp.where(in_light, decay, zero)

        # bev channels 1..7: lane, vehicle, green, yellow, red, pedestrian, offroad
        ch_dec = (dec_side, dec_car, dec_light, dec_light, dec_light, dec_car, dec_side)
        rows = []
        for c in range(7):                                       # static unroll
            ch = bev_ref[i, c + 1]                               # (S, 128)
            contrib = jnp.where(ch > 0.5, ch_dec[c], zero)
            rows.append(jnp.sum(contrib, axis=0, keepdims=True))  # (1, 128)
        rows.append(jnp.zeros((1, 128), jnp.float32))            # pad row -> full tile
        cost_ref[i] = jnp.concatenate(rows, axis=0)              # one unmasked (8,128) store
        return carry

    if gb <= _UNROLL_GB:
        for i in range(gb):                                      # cheap for small Gb
            body(i, 0)
    else:
        # visible loop bounds per-iteration temporaries' live ranges (VMEM/vregs)
        lax.fori_loop(0, gb, body, 0)


# ------------------------------------------------------------------------------
# Wrapper
# ------------------------------------------------------------------------------
def _choose_gb(B, Tm1, C, HW, bev_itemsize, budget_bytes=36 * 1024 * 1024):
    """Largest divisor of B whose double-buffered blocks + in-kernel temporaries
    fit the VMEM budget (sized to be safe on v7x's 64 MiB)."""
    per = bev_itemsize * C * HW + 2 * 3 * HW + 4 * 8 * 128   # bev + bf16 masks + cost tile
    temps = 20 * HW * 4                                      # elementwise temporaries (1 iter)

    def fits(g):
        return 2 * g * per + temps <= budget_bytes           # x2 = double buffering

    gb = 1
    for cand in range(1, B + 1):
        if B % cand == 0 and fits(cand):
            gb = cand
    # megacore balance (v7x, 2 TCs): avoid collapsing the grid to (1, odd)
    if gb == B and B > 1 and Tm1 % 2 == 1:
        smaller = [d for d in range(1, B) if B % d == 0 and fits(d)]
        if smaller:
            gb = max(smaller)
    return gb


@functools.partial(jax.jit, static_argnames=("image_width", "image_height", "reduction"))
def cost_forward(location, yaw, speed, bev, *, image_width, image_height,
                 reduction="mean"):
    B, T = location.shape[0], location.shape[1]
    Tm1 = T - 1
    H, W = image_height, image_width
    HW = H * W
    assert HW % 128 == 0, "H*W must be a multiple of 128 for the lane-dense layout"
    S = HW // 128
    C = bev.shape[2]
    assert C >= 8, "bev must have at least 8 semantic channels"
    G = B * Tm1

    x, y, yaw_, dy, dy_light, decay = _pose_params(location, yaw, speed)
    # flat 1-D SMEM params: [x, y, cos, sin, dy, dy_light, decay, pad] per (b,t)
    # TODO(synk): for very large B*T switch to a per-step blocked SMEM spec
    # (1-D SMEM pads to the next power of two of its byte size).
    params = jnp.stack(
        [x, y, jnp.cos(yaw_), jnp.sin(yaw_), dy, dy_light, decay,
         jnp.zeros_like(x)],
        axis=-1).reshape(G * 8).astype(jnp.float32)

    coords = _coordinate_grid(H, W)            # (2, S, 128), whole-array VMEM resident

    # Free metadata reshape (merge/split of trailing contiguous dims): no copy.
    bev_r = bev.reshape(B, T, C, S, 128)

    Gb = _choose_gb(B, Tm1, C, HW, bev.dtype.itemsize)
    grid = (B // Gb, Tm1)

    kernel = functools.partial(_cost_kernel, gb=Gb, tm1=Tm1)

    grid_spec = pltpu.PrefetchScalarGridSpec(
        num_scalar_prefetch=0,
        grid=grid,
        in_specs=[
            pl.BlockSpec(memory_space=pltpu.MemorySpace.SMEM),        # params (G*8,)
            pl.BlockSpec(memory_space=pltpu.MemorySpace.VMEM),        # coords, fetched once
            pl.BlockSpec((Gb, None, C, S, 128),
                         lambda bb, t: (bb, t + 1, 0, 0, 0)),         # bev block (time t+1)
        ],
        out_specs=[
            pl.BlockSpec((Gb, None, S, 128), lambda bb, t: (bb, t, 0, 0)),  # mask_car
            pl.BlockSpec((Gb, None, S, 128), lambda bb, t: (bb, t, 0, 0)),  # mask_side
            pl.BlockSpec((Gb, None, S, 128), lambda bb, t: (bb, t, 0, 0)),  # mask_light
            pl.BlockSpec((Gb, None, 8, 128), lambda bb, t: (bb, t, 0, 0)),  # cost partials
        ],
    )
    out_shapes = (
        jax.ShapeDtypeStruct((B, Tm1, S, 128), jnp.bfloat16),
        jax.ShapeDtypeStruct((B, Tm1, S, 128), jnp.bfloat16),
        jax.ShapeDtypeStruct((B, Tm1, S, 128), jnp.bfloat16),
        jax.ShapeDtypeStruct((B, Tm1, 8, 128), jnp.float32),
    )

    mcar, mside, mlight, cost_part = pl.pallas_call(
        kernel,
        out_shape=out_shapes,
        grid_spec=grid_spec,
        compiler_params=pltpu.CompilerParams(
            dimension_semantics=("parallel", "parallel"),
            vmem_limit_bytes=48 * 1024 * 1024),
    )(params, coords, bev_r)

    sums = jnp.sum(cost_part, axis=(0, 1, 3))[:7]                    # (7,)
    if reduction == "mean":
        costs = sums / float(G * HW)
    elif reduction == "sum":
        costs = sums
    else:
        # TODO(synk): 'batch-sum' / 'batch-mean' variants not implemented.
        raise NotImplementedError(reduction)

    shp = (B, Tm1, H, W)
    return {
        "lane_cost": costs[0],
        "vehicle_cost": costs[1],
        "green_light_cost": costs[2],
        "yellow_light_cost": costs[3],
        "red_light_cost": costs[4],
        "pedestrian_cost": costs[5],
        "offroad_cost": costs[6],
        # masks returned in bf16 (values are exact 0/1); keeps HBM write savings
        "mask_car": mcar.reshape(shp),
        "mask_side": mside.reshape(shp),
        "mask_light": mlight.reshape(shp),
    }


# ------------------------------------------------------------------------------
# Pure-JAX reference (same reconstructed semantics) for a correctness check
# ------------------------------------------------------------------------------
def cost_reference(location, yaw, speed, bev, *, image_width, image_height):
    B, T = location.shape[0], location.shape[1]
    H, W = image_height, image_width

    x, y, yaw_, dy, dy_light, decay = _pose_params(location, yaw, speed)

    j = jnp.arange(W, dtype=jnp.float32)
    i = jnp.arange(H, dtype=jnp.float32)
    X = jnp.broadcast_to((j[None, :] - W / 2.0) / PIXELS_PER_METER, (H, W))[None, None]
    Y = jnp.broadcast_to((H / 2.0 - i[:, None]) / PIXELS_PER_METER, (H, W))[None, None]
    ct, st = jnp.cos(yaw_), jnp.sin(yaw_)

    def align(px, py):
        tx = X - px[..., None, None]
        ty = Y - py[..., None, None]
        lx = ct[..., None, None] * tx + st[..., None, None] * ty
        ly = -st[..., None, None] * tx + ct[..., None, None] * ty
        return lx, ly

    def box(lx, ly, half_w, fwd):
        inside = (jnp.abs(lx) <= half_w) & (ly >= -HALF_LEN) & (ly <= fwd[..., None, None])
        return jnp.where(inside, 1.0, 0.0)

    lx, ly = align(x, y)
    lxl, lyl = align(x + LIGHT_OFFSET_X, y + LIGHT_OFFSET_Y)
    mask_car = box(lx, ly, DX, dy)
    mask_side = box(lx, ly, DX * SIDE_FACTOR, dy)
    mask_light = box(lxl, lyl, DX_LIGHT, dy_light)

    bev_bin = jnp.where(bev[:, 1:] > 0.5, 1.0, 0.0)
    dw = decay[..., None, None]
    chans = {
        "lane_cost": (1, mask_side), "vehicle_cost": (2, mask_car),
        "green_light_cost": (3, mask_light), "yellow_light_cost": (4, mask_light),
        "red_light_cost": (5, mask_light), "pedestrian_cost": (6, mask_car),
        "offroad_cost": (7, mask_side),
    }
    out = {k: jnp.mean(bev_bin[:, :, c] * m * dw) for k, (c, m) in chans.items()}
    out.update(mask_car=mask_car, mask_side=mask_side, mask_light=mask_light)
    return out


# ------------------------------------------------------------------------------
if __name__ == "__main__":
    B, T, C, H, W = 2, 9, 8, 32, 32     # image_width = W, image_height = H

    key = jax.random.PRNGKey(0)
    k1, k2, k3, k4 = jax.random.split(key, 4)
    location = jax.random.normal(k1, (B, T, 2), dtype=jnp.float32) * 1.5
    yaw = jax.random.uniform(k2, (B, T, 1), minval=-0.5, maxval=0.5,
                             dtype=jnp.float32)
    speed = jax.random.uniform(k3, (B, T, 1), minval=0.0, maxval=8.0,
                               dtype=jnp.float32)
    bev = jax.random.uniform(k4, (B, T, C, H, W), dtype=jnp.float32)

    out = cost_forward(location, yaw, speed, bev,
                       image_width=W, image_height=H, reduction="mean")
    jax.block_until_ready(out)

    ref = cost_reference(location, yaw, speed, bev,
                         image_width=W, image_height=H)

    for k in ["lane_cost", "vehicle_cost", "green_light_cost", "yellow_light_cost",
              "red_light_cost", "pedestrian_cost", "offroad_cost",
              "mask_car", "mask_side", "mask_light"]:
        a = jnp.asarray(out[k], dtype=jnp.float32)
        b = jnp.asarray(ref[k], dtype=jnp.float32)
        assert a.shape == b.shape, (k, a.shape, b.shape)
        assert bool(jnp.allclose(a, b, rtol=1e-4, atol=1e-5)), k

    print("KERNEL_OK")
</pallas_src>

<mosaic_0001>
module attributes {stable_mosaic.version = 11 : i64} {
  func.func @_cost_kernel(%arg0: i32, %arg1: i32, %arg2: memref<128xf32, #tpu.memory_space<smem>>, %arg3: memref<2x8x128xf32, #tpu.memory_space<vmem>>, %arg4: memref<2x1x8x8x128xf32, #tpu.memory_space<vmem>>, %arg5: memref<2x1x8x128xbf16, #tpu.memory_space<vmem>>, %arg6: memref<2x1x8x128xbf16, #tpu.memory_space<vmem>>, %arg7: memref<2x1x8x128xbf16, #tpu.memory_space<vmem>>, %arg8: memref<2x1x8x128xf32, #tpu.memory_space<vmem>>) attributes {dimension_semantics = [#tpu.dimension_semantics<parallel>, #tpu.dimension_semantics<parallel>], iteration_bounds = array<i64: 1, 8>, scalar_prefetch = 0 : i64, scratch_operands = 0 : i64, tpu.core_type = #tpu.core_type<tc>, window_params = [{transform_indices = @transform_0, window_bounds = array<i64: 128>}, {pipeline_mode = #tpu.pipeline_mode<synchronous>, transform_indices = @transform_1, window_bounds = array<i64: 2, 8, 128>}, {transform_indices = @transform_2, window_bounds = array<i64: 2, 1, 8, 8, 128>}, {transform_indices = @transform_3, window_bounds = array<i64: 2, 1, 8, 128>}, {transform_indices = @transform_4, window_bounds = array<i64: 2, 1, 8, 128>}, {transform_indices = @transform_5, window_bounds = array<i64: 2, 1, 8, 128>}, {transform_indices = @transform_6, window_bounds = array<i64: 2, 1, 8, 128>}]} {
    %c0 = arith.constant 0 : index
    %c0_0 = arith.constant 0 : index
    %c0_1 = arith.constant 0 : index
    %0 = vector.load %arg3[%c0, %c0_0, %c0_1] : memref<2x8x128xf32, #tpu.memory_space<vmem>>, vector<1x8x128xf32>
    %1 = vector.shape_cast %0 : vector<1x8x128xf32> to vector<8x128xf32>
    %c1 = arith.constant 1 : index
    %c0_2 = arith.constant 0 : index
    %c0_3 = arith.constant 0 : index
    %2 = vector.load %arg3[%c1, %c0_2, %c0_3] : memref<2x8x128xf32, #tpu.memory_space<vmem>>, vector<1x8x128xf32>
    %3 = vector.shape_cast %2 : vector<1x8x128xf32> to vector<8x128xf32>
    %cst = arith.constant 0.000000e+00 : f32
    %4 = vector.broadcast %cst : f32 to vector<8x128xf32>
    %c2_i32 = arith.constant 2 : i32
    %5 = arith.muli %arg0, %c2_i32 : i32
    %c0_i32 = arith.constant 0 : i32
    %6 = arith.addi %5, %c0_i32 : i32
    %c8_i32 = arith.constant 8 : i32
    %7 = arith.muli %6, %c8_i32 : i32
    %8 = arith.addi %7, %arg1 : i32
    %c8_i32_4 = arith.constant 8 : i32
    %9 = arith.muli %8, %c8_i32_4 : i32
    %c0_i32_5 = arith.constant 0 : i32
    %10 = arith.addi %9, %c0_i32_5 : i32
    %11 = arith.index_cast %10 : i32 to index
    %12 = memref.load %arg2[%11] : memref<128xf32, #tpu.memory_space<smem>>
    %c1_i32 = arith.constant 1 : i32
    %13 = arith.addi %9, %c1_i32 : i32
    %14 = arith.index_cast %13 : i32 to index
    %15 = memref.load %arg2[%14] : memref<128xf32, #tpu.memory_space<smem>>
    %c2_i32_6 = arith.constant 2 : i32
    %16 = arith.addi %9, %c2_i32_6 : i32
    %17 = arith.index_cast %16 : i32 to index
    %18 = memref.load %arg2[%17] : memref<128xf32, #tpu.memory_space<smem>>
    %c3_i32 = arith.constant 3 : i32
    %19 = arith.addi %9, %c3_i32 : i32
    %20 = arith.index_cast %19 : i32 to index
    %21 = memref.load %arg2[%20] : memref<128xf32, #tpu.memory_space<smem>>
    %c4_i32 = arith.constant 4 : i32
    %22 = arith.addi %9, %c4_i32 : i32
    %23 = arith.index_cast %22 : i32 to index
    %24 = memref.load %arg2[%23] : memref<128xf32, #tpu.memory_space<smem>>
    %c5_i32 = arith.constant 5 : i32
    %25 = arith.addi %9, %c5_i32 : i32
    %26 = arith.index_cast %25 : i32 to index
    %27 = memref.load %arg2[%26] : memref<128xf32, #tpu.memory_space<smem>>
    %c6_i32 = arith.constant 6 : i32
    %28 = arith.addi %9, %c6_i32 : i32
    %29 = arith.index_cast %28 : i32 to index
    %30 = memref.load %arg2[%29] : memref<128xf32, #tpu.memory_space<smem>>
    %31 = vector.broadcast %12 : f32 to vector<8x128xf32>
    %32 = arith.subf %1, %31 : vector<8x128xf32>
    %33 = vector.broadcast %15 : f32 to vector<8x128xf32>
    %34 = arith.subf %3, %33 : vector<8x128xf32>
    %35 = vector.broadcast %18 : f32 to vector<8x128xf32>
    %36 = arith.mulf %35, %32 : vector<8x128xf32>
    %37 = vector.broadcast %21 : f32 to vector<8x128xf32>
    %38 = arith.mulf %37, %34 : vector<8x128xf32>
    %39 = arith.addf %36, %38 : vector<8x128xf32>
    %cst_7 = arith.constant 0.000000e+00 : f32
    %40 = arith.subf %cst_7, %21 : f32
    %41 = vector.broadcast %40 : f32 to vector<8x128xf32>
    %42 = arith.mulf %41, %32 : vector<8x128xf32>
    %43 = vector.broadcast %18 : f32 to vector<8x128xf32>
    %44 = arith.mulf %43, %34 : vector<8x128xf32>
    %45 = arith.addf %42, %44 : vector<8x128xf32>
    %cst_8 = arith.constant -2.450000e+00 : f32
    %46 = vector.broadcast %cst_8 : f32 to vector<8x128xf32>
    %47 = arith.cmpf oge, %45, %46 : vector<8x128xf32>
    %48 = vector.broadcast %24 : f32 to vector<8x128xf32>
    %49 = arith.cmpf ole, %45, %48 : vector<8x128xf32>
    %50 = arith.andi %47, %49 : vector<8x128xi1>
    %51 = math.absf %39 : vector<8x128xf32>
    %cst_9 = arith.constant 2.050000e+00 : f32
    %52 = vector.broadcast %cst_9 : f32 to vector<8x128xf32>
    %53 = arith.cmpf ole, %51, %52 : vector<8x128xf32>
    %54 = arith.andi %53, %50 : vector<8x128xi1>
    %cst_10 = arith.constant 2.255000e+00 : f32
    %55 = vector.broadcast %cst_10 : f32 to vector<8x128xf32>
    %56 = arith.cmpf ole, %51, %55 : vector<8x128xf32>
    %57 = arith.andi %56, %50 : vector<8x128xi1>
    %cst_11 = arith.constant 1.200000e+01 : f32
    %58 = arith.addf %12, %cst_11 : f32
    %59 = vector.broadcast %58 : f32 to vector<8x128xf32>
    %60 = arith.subf %1, %59 : vector<8x128xf32>
    %cst_12 = arith.constant 3.250000e+00 : f32
    %61 = arith.addf %15, %cst_12 : f32
    %62 = vector.broadcast %61 : f32 to vector<8x128xf32>
    %63 = arith.subf %3, %62 : vector<8x128xf32>
    %64 = vector.broadcast %18 : f32 to vector<8x128xf32>
    %65 = arith.mulf %64, %60 : vector<8x128xf32>
    %66 = vector.broadcast %21 : f32 to vector<8x128xf32>
    %67 = arith.mulf %66, %63 : vector<8x128xf32>
    %68 = arith.addf %65, %67 : vector<8x128xf32>
    %cst_13 = arith.constant 0.000000e+00 : f32
    %69 = arith.subf %cst_13, %21 : f32
    %70 = vector.broadcast %69 : f32 to vector<8x128xf32>
    %71 = arith.mulf %70, %60 : vector<8x128xf32>
    %72 = vector.broadcast %18 : f32 to vector<8x128xf32>
    %73 = arith.mulf %72, %63 : vector<8x128xf32>
    %74 = arith.addf %71, %73 : vector<8x128xf32>
    %75 = math.absf %68 : vector<8x128xf32>
    %cst_14 = arith.constant 3.100000e+00 : f32
    %76 = vector.broadcast %cst_14 : f32 to vector<8x128xf32>
    %77 = arith.cmpf ole, %75, %76 : vector<8x128xf32>
    %cst_15 = arith.constant -2.450000e+00 : f32
    %78 = vector.broadcast %cst_15 : f32 to vector<8x128xf32>
    %79 = arith.cmpf oge, %74, %78 : vector<8x128xf32>
    %80 = arith.andi %77, %79 : vector<8x128xi1>
    %81 = vector.broadcast %27 : f32 to vector<8x128xf32>
    %82 = arith.cmpf ole, %74, %81 : vector<8x128xf32>
    %83 = arith.andi %80, %82 : vector<8x128xi1>
    %84 = arith.extui %54 : vector<8x128xi1> to vector<8x128xi32>
    %85 = arith.sitofp %84 : vector<8x128xi32> to vector<8x128xf32>
    %86 = arith.truncf %85 : vector<8x128xf32> to vector<8x128xbf16>
    %c0_16 = arith.constant 0 : index
    %c0_17 = arith.constant 0 : index
    %c0_18 = arith.constant 0 : index
    %c0_19 = arith.constant 0 : index
    %87 = vector.load %arg5[%c0_16, %c0_17, %c0_18, %c0_19] : memref<2x1x8x128xbf16, #tpu.memory_space<vmem>>, vector<1x1x8x128xbf16>
    %88 = vector.shape_cast %87 : vector<1x1x8x128xbf16> to vector<8x128xbf16>
    %89 = vector.shape_cast %86 : vector<8x128xbf16> to vector<1x1x8x128xbf16>
    tpu.vector_store %arg5[%c0_16, %c0_17, %c0_18, %c0_19], %89 {strides = array<i32>} : memref<2x1x8x128xbf16, #tpu.memory_space<vmem>>, vector<1x1x8x128xbf16>,
    %90 = arith.extui %57 : vector<8x128xi1> to vector<8x128xi32>
    %91 = arith.sitofp %90 : vector<8x128xi32> to vector<8x128xf32>
    %92 = arith.truncf %91 : vector<8x128xf32> to vector<8x128xbf16>
    %c0_20 = arith.constant 0 : index
    %c0_21 = arith.constant 0 : index
    %c0_22 = arith.constant 0 : index
    %c0_23 = arith.constant 0 : index
    %93 = vector.load %arg6[%c0_20, %c0_21, %c0_22, %c0_23] : memref<2x1x8x128xbf16, #tpu.memory_space<vmem>>, vector<1x1x8x128xbf16>
    %94 = vector.shape_cast %93 : vector<1x1x8x128xbf16> to vector<8x128xbf16>
    %95 = vector.shape_cast %92 : vector<8x128xbf16> to vector<1x1x8x128xbf16>
    tpu.vector_store %arg6[%c0_20, %c0_21, %c0_22, %c0_23], %95 {strides = array<i32>} : memref<2x1x8x128xbf16, #tpu.memory_space<vmem>>, vector<1x1x8x128xbf16>,
    %96 = arith.extui %83 : vector<8x128xi1> to vector<8x128xi32>
    %97 = arith.sitofp %96 : vector<8x128xi32> to vector<8x128xf32>
    %98 = arith.truncf %97 : vector<8x128xf32> to vector<8x128xbf16>
    %c0_24 = arith.constant 0 : index
    %c0_25 = arith.constant 0 : index
    %c0_26 = arith.constant 0 : index
    %c0_27 = arith.constant 0 : index
    %99 = vector.load %arg7[%c0_24, %c0_25, %c0_26, %c0_27] : memref<2x1x8x128xbf16, #tpu.memory_space<vmem>>, vector<1x1x8x128xbf16>
    %100 = vector.shape_cast %99 : vector<1x1x8x128xbf16> to vector<8x128xbf16>
    %101 = vector.shape_cast %98 : vector<8x128xbf16> to vector<1x1x8x128xbf16>
    tpu.vector_store %arg7[%c0_24, %c0_25, %c0_26, %c0_27], %101 {strides = array<i32>} : memref<2x1x8x128xbf16, #tpu.memory_space<vmem>>, vector<1x1x8x128xbf16>,
    %102 = vector.broadcast %30 : f32 to vector<8x128xf32>
    %103 = arith.select %54, %102, %4 : vector<8x128xi1>, vector<8x128xf32>
    %104 = vector.broadcast %30 : f32 to vector<8x128xf32>
    %105 = arith.select %57, %104, %4 : vector<8x128xi1>, vector<8x128xf32>
    %106 = vector.broadcast %30 : f32 to vector<8x128xf32>
    %107 = arith.select %83, %106, %4 : vector<8x128xi1>, vector<8x128xf32>
    %c0_28 = arith.constant 0 : index
    %c0_29 = arith.constant 0 : index
    %c1_30 = arith.constant 1 : index
    %c0_31 = arith.constant 0 : index
    %c0_32 = arith.constant 0 : index
    %108 = vector.load %arg4[%c0_28, %c0_29, %c1_30, %c0_31, %c0_32] : memref<2x1x8x8x128xf32, #tpu.memory_space<vmem>>, vector<1x1x1x8x128xf32>
    %109 = vector.shape_cast %108 : vector<1x1x1x8x128xf32> to vector<8x128xf32>
    %cst_33 = arith.constant 5.000000e-01 : f32
    %110 = vector.broadcast %cst_33 : f32 to vector<8x128xf32>
    %111 = arith.cmpf ogt, %109, %110 : vector<8x128xf32>
    %112 = arith.select %111, %105, %4 : vector<8x128xi1>, vector<8x128xf32>
    %cst_34 = arith.constant dense<0.000000e+00> : vector<128xf32>
    %113 = vector.multi_reduction <add>, %112, %cst_34 [0] : vector<8x128xf32> to vector<128xf32>
    %114 = vector.shape_cast %113 : vector<128xf32> to vector<1x128xf32>
    %c0_35 = arith.constant 0 : index
    %c0_36 = arith.constant 0 : index
    %c2 = arith.constant 2 : index
    %c0_37 = arith.constant 0 : index
    %c0_38 = arith.constant 0 : index
    %115 = vector.load %arg4[%c0_35, %c0_36, %c2, %c0_37, %c0_38] : memref<2x1x8x8x128xf32, #tpu.memory_space<vmem>>, vector<1x1x1x8x128xf32>
    %116 = vector.shape_cast %115 : vector<1x1x1x8x128xf32> to vector<8x128xf32>
    %cst_39 = arith.constant 5.000000e-01 : f32
    %117 = vector.broadcast %cst_39 : f32 to vector<8x128xf32>
    %118 = arith.cmpf ogt, %116, %117 : vector<8x128xf32>
    %119 = arith.select %118, %103, %4 : vector<8x128xi1>, vector<8x128xf32>
    %cst_40 = arith.constant dense<0.000000e+00> : vector<128xf32>
    %120 = vector.multi_reduction <add>, %119, %cst_40 [0] : vector<8x128xf32> to vector<128xf32>
    %121 = vector.shape_cast %120 : vector<128xf32> to vector<1x128xf32>
    %c0_41 = arith.constant 0 : index
    %c0_42 = arith.constant 0 : index
    %c3 = arith.constant 3 : index
    %c0_43 = arith.constant 0 : index
    %c0_44 = arith.constant 0 : index
    %122 = vector.load %arg4[%c0_41, %c0_42, %c3, %c0_43, %c0_44] : memref<2x1x8x8x128xf32, #tpu.memory_space<vmem>>, vector<1x1x1x8x128xf32>
    %123 = vector.shape_cast %122 : vector<1x1x1x8x128xf32> to vector<8x128xf32>
    %cst_45 = arith.constant 5.000000e-01 : f32
    %124 = vector.broadcast %cst_45 : f32 to vector<8x128xf32>
    %125 = arith.cmpf ogt, %123, %124 : vector<8x128xf32>
    %126 = arith.select %125, %107, %4 : vector<8x128xi1>, vector<8x128xf32>
    %cst_46 = arith.constant dense<0.000000e+00> : vector<128xf32>
    %127 = vector.multi_reduction <add>, %126, %cst_46 [0] : vector<8x128xf32> to vector<128xf32>
    %128 = vector.shape_cast %127 : vector<128xf32> to vector<1x128xf32>
    %c0_47 = arith.constant 0 : index
    %c0_48 = arith.constant 0 : index
    %c4 = arith.constant 4 : index
    %c0_49 = arith.constant 0 : index
    %c0_50 = arith.constant 0 : index
    %129 = vector.load %arg4[%c0_47, %c0_48, %c4, %c0_49, %c0_50] : memref<2x1x8x8x128xf32, #tpu.memory_space<vmem>>, vector<1x1x1x8x128xf32>
    %130 = vector.shape_cast %129 : vector<1x1x1x8x128xf32> to vector<8x128xf32>
    %cst_51 = arith.constant 5.000000e-01 : f32
    %131 = vector.broadcast %cst_51 : f32 to vector<8x128xf32>
    %132 = arith.cmpf ogt, %130, %131 : vector<8x128xf32>
    %133 = arith.select %132, %107, %4 : vector<8x128xi1>, vector<8x128xf32>
    %cst_52 = arith.constant dense<0.000000e+00> : vector<128xf32>
    %134 = vector.multi_reduction <add>, %133, %cst_52 [0] : vector<8x128xf32> to vector<128xf32>
    %135 = vector.shape_cast %134 : vector<128xf32> to vector<1x128xf32>
    %c0_53 = arith.constant 0 : index
    %c0_54 = arith.constant 0 : index
    %c5 = arith.constant 5 : index
    %c0_55 = arith.constant 0 : index
    %c0_56 = arith.constant 0 : index
    %136 = vector.load %arg4[%c0_53, %c0_54, %c5, %c0_55, %c0_56] : memref<2x1x8x8x128xf32, #tpu.memory_space<vmem>>, vector<1x1x1x8x128xf32>
    %137 = vector.shape_cast %136 : vector<1x1x1x8x128xf32> to vector<8x128xf32>
    %cst_57 = arith.constant 5.000000e-01 : f32
    %138 = vector.broadcast %cst_57 : f32 to vector<8x128xf32>
    %139 = arith.cmpf ogt, %137, %138 : vector<8x128xf32>
    %140 = arith.select %139, %107, %4 : vector<8x128xi1>, vector<8x128xf32>
    %cst_58 = arith.constant dense<0.000000e+00> : vector<128xf32>
    %141 = vector.multi_reduction <add>, %140, %cst_58 [0] : vector<8x128xf32> to vector<128xf32>
    %142 = vector.shape_cast %141 : vector<128xf32> to vector<1x128xf32>
    %c0_59 = arith.constant 0 : index
    %c0_60 = arith.constant 0 : index
    %c6 = arith.constant 6 : index
    %c0_61 = arith.constant 0 : index
    %c0_62 = arith.constant 0 : index
    %143 = vector.load %arg4[%c0_59, %c0_60, %c6, %c0_61, %c0_62] : memref<2x1x8x8x128xf32, #tpu.memory_space<vmem>>, vector<1x1x1x8x128xf32>
    %144 = vector.shape_cast %143 : vector<1x1x1x8x128xf32> to vector<8x128xf32>
    %cst_63 = arith.constant 5.000000e-01 : f32
    %145 = vector.broadcast %cst_63 : f32 to vector<8x128xf32>
    %146 = arith.cmpf ogt, %144, %145 : vector<8x128xf32>
    %147 = arith.select %146, %103, %4 : vector<8x128xi1>, vector<8x128xf32>
    %cst_64 = arith.constant dense<0.000000e+00> : vector<128xf32>
    %148 = vector.multi_reduction <add>, %147, %cst_64 [0] : vector<8x128xf32> to vector<128xf32>
    %149 = vector.shape_cast %148 : vector<128xf32> to vector<1x128xf32>
    %c0_65 = arith.constant 0 : index
    %c0_66 = arith.constant 0 : index
    %c7 = arith.constant 7 : index
    %c0_67 = arith.constant 0 : index
    %c0_68 = arith.constant 0 : index
    %150 = vector.load %arg4[%c0_65, %c0_66, %c7, %c0_67, %c0_68] : memref<2x1x8x8x128xf32, #tpu.memory_space<vmem>>, vector<1x1x1x8x128xf32>
    %151 = vector.shape_cast %150 : vector<1x1x1x8x128xf32> to vector<8x128xf32>
    %cst_69 = arith.constant 5.000000e-01 : f32
    %152 = vector.broadcast %cst_69 : f32 to vector<8x128xf32>
    %153 = arith.cmpf ogt, %151, %152 : vector<8x128xf32>
    %154 = arith.select %153, %105, %4 : vector<8x128xi1>, vector<8x128xf32>
    %cst_70 = arith.constant dense<0.000000e+00> : vector<128xf32>
    %155 = vector.multi_reduction <add>, %154, %cst_70 [0] : vector<8x128xf32> to vector<128xf32>
    %156 = vector.shape_cast %155 : vector<128xf32> to vector<1x128xf32>
    %cst_71 = arith.constant 0.000000e+00 : f32
    %157 = vector.broadcast %cst_71 : f32 to vector<1x128xf32>
    %158 = tpu.concatenate %114, %121, %128, %135, %142, %149, %156, %157 in 0 : vector<1x128xf32>, vector<1x128xf32>, vector<1x128xf32>, vector<1x128xf32>, vector<1x128xf32>, vector<1x128xf32>, vector<1x128xf32>, vector<1x128xf32> -> vector<8x128xf32>
    %c0_72 = arith.constant 0 : index
    %c0_73 = arith.constant 0 : index
    %c0_74 = arith.constant 0 : index
    %c0_75 = arith.constant 0 : index
    %159 = vector.load %arg8[%c0_72, %c0_73, %c0_74, %c0_75] : memref<2x1x8x128xf32, #tpu.memory_space<vmem>>, vector<1x1x8x128xf32>
    %160 = vector.shape_cast %159 : vector<1x1x8x128xf32> to vector<8x128xf32>
    %161 = vector.shape_cast %158 : vector<8x128xf32> to vector<1x1x8x128xf32>
    tpu.vector_store %arg8[%c0_72, %c0_73, %c0_74, %c0_75], %161 {strides = array<i32>} : memref<2x1x8x128xf32, #tpu.memory_space<vmem>>, vector<1x1x8x128xf32>,
    %c2_i32_76 = arith.constant 2 : i32
    %162 = arith.muli %arg0, %c2_i32_76 : i32
    %c1_i32_77 = arith.constant 1 : i32
    %163 = arith.addi %162, %c1_i32_77 : i32
    %c8_i32_78 = arith.constant 8 : i32
    %164 = arith.muli %163, %c8_i32_78 : i32
    %165 = arith.addi %164, %arg1 : i32
    %c8_i32_79 = arith.constant 8 : i32
    %166 = arith.muli %165, %c8_i32_79 : i32
    %c0_i32_80 = arith.constant 0 : i32
    %167 = arith.addi %166, %c0_i32_80 : i32
    %168 = arith.index_cast %167 : i32 to index
    %169 = memref.load %arg2[%168] : memref<128xf32, #tpu.memory_space<smem>>
    %c1_i32_81 = arith.constant 1 : i32
    %170 = arith.addi %166, %c1_i32_81 : i32
    %171 = arith.index_cast %170 : i32 to index
    %172 = memref.load %arg2[%171] : memref<128xf32, #tpu.memory_space<smem>>
    %c2_i32_82 = arith.constant 2 : i32
    %173 = arith.addi %166, %c2_i32_82 : i32
    %174 = arith.index_cast %173 : i32 to index
    %175 = memref.load %arg2[%174] : memref<128xf32, #tpu.memory_space<smem>>
    %c3_i32_83 = arith.constant 3 : i32
    %176 = arith.addi %166, %c3_i32_83 : i32
    %177 = arith.index_cast %176 : i32 to index
    %178 = memref.load %arg2[%177] : memref<128xf32, #tpu.memory_space<smem>>
    %c4_i32_84 = arith.constant 4 : i32
    %179 = arith.addi %166, %c4_i32_84 : i32
    %180 = arith.index_cast %179 : i32 to index
    %181 = memref.load %arg2[%180] : memref<128xf32, #tpu.memory_space<smem>>
    %c5_i32_85 = arith.constant 5 : i32
    %182 = arith.addi %166, %c5_i32_85 : i32
    %183 = arith.index_cast %182 : i32 to index
    %184 = memref.load %arg2[%183] : memref<128xf32, #tpu.memory_space<smem>>
    %c6_i32_86 = arith.constant 6 : i32
    %185 = arith.addi %166, %c6_i32_86 : i32
    %186 = arith.index_cast %185 : i32 to index
    %187 = memref.load %arg2[%186] : memref<128xf32, #tpu.memory_space<smem>>
    %188 = vector.broadcast %169 : f32 to vector<8x128xf32>
    %189 = arith.subf %1, %188 : vector<8x128xf32>
    %190 = vector.broadcast %172 : f32 to vector<8x128xf32>
    %191 = arith.subf %3, %190 : vector<8x128xf32>
    %192 = vector.broadcast %175 : f32 to vector<8x128xf32>
    %193 = arith.mulf %192, %189 : vector<8x128xf32>
    %194 = vector.broadcast %178 : f32 to vector<8x128xf32>
    %195 = arith.mulf %194, %191 : vector<8x128xf32>
    %196 = arith.addf %193, %195 : vector<8x128xf32>
    %cst_87 = arith.constant 0.000000e+00 : f32
    %197 = arith.subf %cst_87, %178 : f32
    %198 = vector.broadcast %197 : f32 to vector<8x128xf32>
    %199 = arith.mulf %198, %189 : vector<8x128xf32>
    %200 = vector.broadcast %175 : f32 to vector<8x128xf32>
    %201 = arith.mulf %200, %191 : vector<8x128xf32>
    %202 = arith.addf %199, %201 : vector<8x128xf32>
    %cst_88 = arith.constant -2.450000e+00 : f32
    %203 = vector.broadcast %cst_88 : f32 to vector<8x128xf32>
    %204 = arith.cmpf oge, %202, %203 : vector<8x128xf32>
    %205 = vector.broadcast %181 : f32 to vector<8x128xf32>
    %206 = arith.cmpf ole, %202, %205 : vector<8x128xf32>
    %207 = arith.andi %204, %206 : vector<8x128xi1>
    %208 = math.absf %196 : vector<8x128xf32>
    %cst_89 = arith.constant 2.050000e+00 : f32
    %209 = vector.broadcast %cst_89 : f32 to vector<8x128xf32>
    %210 = arith.cmpf ole, %208, %209 : vector<8x128xf32>
    %211 = arith.andi %210, %207 : vector<8x128xi1>
    %cst_90 = arith.constant 2.255000e+00 : f32
    %212 = vector.broadcast %cst_90 : f32 to vector<8x128xf32>
    %213 = arith.cmpf ole, %208, %212 : vector<8x128xf32>
    %214 = arith.andi %213, %207 : vector<8x128xi1>
    %cst_91 = arith.constant 1.200000e+01 : f32
    %215 = arith.addf %169, %cst_91 : f32
    %216 = vector.broadcast %215 : f32 to vector<8x128xf32>
    %217 = arith.subf %1, %216 : vector<8x128xf32>
    %cst_92 = arith.constant 3.250000e+00 : f32
    %218 = arith.addf %172, %cst_92 : f32
    %219 = vector.broadcast %218 : f32 to vector<8x128xf32>
    %220 = arith.subf %3, %219 : vector<8x128xf32>
    %221 = vector.broadcast %175 : f32 to vector<8x128xf32>
    %222 = arith.mulf %221, %217 : vector<8x128xf32>
    %223 = vector.broadcast %178 : f32 to vector<8x128xf32>
    %224 = arith.mulf %223, %220 : vector<8x128xf32>
    %225 = arith.addf %222, %224 : vector<8x128xf32>
    %cst_93 = arith.constant 0.000000e+00 : f32
    %226 = arith.subf %cst_93, %178 : f32
    %227 = vector.broadcast %226 : f32 to vector<8x128xf32>
    %228 = arith.mulf %227, %217 : vector<8x128xf32>
    %229 = vector.broadcast %175 : f32 to vector<8x128xf32>
    %230 = arith.mulf %229, %220 : vector<8x128xf32>
    %231 = arith.addf %228, %230 : vector<8x128xf32>
    %232 = math.absf %225 : vector<8x128xf32>
    %cst_94 = arith.constant 3.100000e+00 : f32
    %233 = vector.broadcast %cst_94 : f32 to vector<8x128xf32>
    %234 = arith.cmpf ole, %232, %233 : vector<8x128xf32>
    %cst_95 = arith.constant -2.450000e+00 : f32
    %235 = vector.broadcast %cst_95 : f32 to vector<8x128xf32>
    %236 = arith.cmpf oge, %231, %235 : vector<8x128xf32>
    %237 = arith.andi %234, %236 : vector<8x128xi1>
    %238 = vector.broadcast %184 : f32 to vector<8x128xf32>
    %239 = arith.cmpf ole, %231, %238 : vector<8x128xf32>
    %240 = arith.andi %237, %239 : vector<8x128xi1>
    %241 = arith.extui %211 : vector<8x128xi1> to vector<8x128xi32>
    %242 = arith.sitofp %241 : vector<8x128xi32> to vector<8x128xf32>
    %243 = arith.truncf %242 : vector<8x128xf32> to vector<8x128xbf16>
    %c1_96 = arith.constant 1 : index
    %c0_97 = arith.constant 0 : index
    %c0_98 = arith.constant 0 : index
    %c0_99 = arith.constant 0 : index
    %244 = vector.load %arg5[%c1_96, %c0_97, %c0_98, %c0_99] : memref<2x1x8x128xbf16, #tpu.memory_space<vmem>>, vector<1x1x8x128xbf16>
    %245 = vector.shape_cast %244 : vector<1x1x8x128xbf16> to vector<8x128xbf16>
    %246 = vector.shape_cast %243 : vector<8x128xbf16> to vector<1x1x8x128xbf16>
    tpu.vector_store %arg5[%c1_96, %c0_97, %c0_98, %c0_99], %246 {strides = array<i32>} : memref<2x1x8x128xbf16, #tpu.memory_space<vmem>>, vector<1x1x8x128xbf16>,
    %247 = arith.extui %214 : vector<8x128xi1> to vector<8x128xi32>
    %248 = arith.sitofp %247 : vector<8x128xi32> to vector<8x128xf32>
    %249 = arith.truncf %248 : vector<8x128xf32> to vector<8x128xbf16>
    %c1_100 = arith.constant 1 : index
    %c0_101 = arith.constant 0 : index
    %c0_102 = arith.constant 0 : index
    %c0_103 = arith.constant 0 : index
    %250 = vector.load %arg6[%c1_100, %c0_101, %c0_102, %c0_103] : memref<2x1x8x128xbf16, #tpu.memory_space<vmem>>, vector<1x1x8x128xbf16>
    %251 = vector.shape_cast %250 : vector<1x1x8x128xbf16> to vector<8x128xbf16>
    %252 = vector.shape_cast %249 : vector<8x128xbf16> to vector<1x1x8x128xbf16>
    tpu.vector_store %arg6[%c1_100, %c0_101, %c0_102, %c0_103], %252 {strides = array<i32>} : memref<2x1x8x128xbf16, #tpu.memory_space<vmem>>, vector<1x1x8x128xbf16>,
    %253 = arith.extui %240 : vector<8x128xi1> to vector<8x128xi32>
    %254 = arith.sitofp %253 : vector<8x128xi32> to vector<8x128xf32>
    %255 = arith.truncf %254 : vector<8x128xf32> to vector<8x128xbf16>
    %c1_104 = arith.constant 1 : index
    %c0_105 = arith.constant 0 : index
    %c0_106 = arith.constant 0 : index
    %c0_107 = arith.constant 0 : index
    %256 = vector.load %arg7[%c1_104, %c0_105, %c0_106, %c0_107] : memref<2x1x8x128xbf16, #tpu.memory_space<vmem>>, vector<1x1x8x128xbf16>
    %257 = vector.shape_cast %256 : vector<1x1x8x128xbf16> to vector<8x128xbf16>
    %258 = vector.shape_cast %255 : vector<8x128xbf16> to vector<1x1x8x128xbf16>
    tpu.vector_store %arg7[%c1_104, %c0_105, %c0_106, %c0_107], %258 {strides = array<i32>} : memref<2x1x8x128xbf16, #tpu.memory_space<vmem>>, vector<1x1x8x128xbf16>,
    %259 = vector.broadcast %187 : f32 to vector<8x128xf32>
    %260 = arith.select %211, %259, %4 : vector<8x128xi1>, vector<8x128xf32>
    %261 = vector.broadcast %187 : f32 to vector<8x128xf32>
    %262 = arith.select %214, %261, %4 : vector<8x128xi1>, vector<8x128xf32>
    %263 = vector.broadcast %187 : f32 to vector<8x128xf32>
    %264 = arith.select %240, %263, %4 : vector<8x128xi1>, vector<8x128xf32>
    %c1_108 = arith.constant 1 : index
    %c0_109 = arith.constant 0 : index
    %c1_110 = arith.constant 1 : index
    %c0_111 = arith.constant 0 : index
    %c0_112 = arith.constant 0 : index
    %265 = vector.load %arg4[%c1_108, %c0_109, %c1_110, %c0_111, %c0_112] : memref<2x1x8x8x128xf32, #tpu.memory_space<vmem>>, vector<1x1x1x8x128xf32>
    %266 = vector.shape_cast %265 : vector<1x1x1x8x128xf32> to vector<8x128xf32>
    %cst_113 = arith.constant 5.000000e-01 : f32
    %267 = vector.broadcast %cst_113 : f32 to vector<8x128xf32>
    %268 = arith.cmpf ogt, %266, %267 : vector<8x128xf32>
    %269 = arith.select %268, %262, %4 : vector<8x128xi1>, vector<8x128xf32>
    %cst_114 = arith.constant dense<0.000000e+00> : vector<128xf32>
    %270 = vector.multi_reduction <add>, %269, %cst_114 [0] : vector<8x128xf32> to vector<128xf32>
    %271 = vector.shape_cast %270 : vector<128xf32> to vector<1x128xf32>
    %c1_115 = arith.constant 1 : index
    %c0_116 = arith.constant 0 : index
    %c2_117 = arith.constant 2 : index
    %c0_118 = arith.constant 0 : index
    %c0_119 = arith.constant 0 : index
    %272 = vector.load %arg4[%c1_115, %c0_116, %c2_117, %c0_118, %c0_119] : memref<2x1x8x8x128xf32, #tpu.memory_space<vmem>>, vector<1x1x1x8x128xf32>
    %273 = vector.shape_cast %272 : vector<1x1x1x8x128xf32> to vector<8x128xf32>
    %cst_120 = arith.constant 5.000000e-01 : f32
    %274 = vector.broadcast %cst_120 : f32 to vector<8x128xf32>
    %275 = arith.cmpf ogt, %273, %274 : vector<8x128xf32>
    %276 = arith.select %275, %260, %4 : vector<8x128xi1>, vector<8x128xf32>
    %cst_121 = arith.constant dense<0.000000e+00> : vector<128xf32>
    %277 = vector.multi_reduction <add>, %276, %cst_121 [0] : vector<8x128xf32> to vector<128xf32>
    %278 = vector.shape_cast %277 : vector<128xf32> to vector<1x128xf32>
    %c1_122 = arith.constant 1 : index
    %c0_123 = arith.constant 0 : index
    %c3_124 = arith.constant 3 : index
    %c0_125 = arith.constant 0 : index
    %c0_126 = arith.constant 0 : index
    %279 = vector.load %arg4[%c1_122, %c0_123, %c3_124, %c0_125, %c0_126] : memref<2x1x8x8x128xf32, #tpu.memory_space<vmem>>, vector<1x1x1x8x128xf32>
    %280 = vector.shape_cast %279 : vector<1x1x1x8x128xf32> to vector<8x128xf32>
    %cst_127 = arith.constant 5.000000e-01 : f32
    %281 = vector.broadcast %cst_127 : f32 to vector<8x128xf32>
    %282 = arith.cmpf ogt, %280, %281 : vector<8x128xf32>
    %283 = arith.select %282, %264, %4 : vector<8x128xi1>, vector<8x128xf32>
    %cst_128 = arith.constant dense<0.000000e+00> : vector<128xf32>
    %284 = vector.multi_reduction <add>, %283, %cst_128 [0] : vector<8x128xf32> to vector<128xf32>
    %285 = vector.shape_cast %284 : vector<128xf32> to vector<1x128xf32>
    %c1_129 = arith.constant 1 : index
    %c0_130 = arith.constant 0 : index
    %c4_131 = arith.constant 4 : index
    %c0_132 = arith.constant 0 : index
    %c0_133 = arith.constant 0 : index
    %286 = vector.load %arg4[%c1_129, %c0_130, %c4_131, %c0_132, %c0_133] : memref<2x1x8x8x128xf32, #tpu.memory_space<vmem>>, vector<1x1x1x8x128xf32>
    %287 = vector.shape_cast %286 : vector<1x1x1x8x128xf32> to vector<8x128xf32>
    %cst_134 = arith.constant 5.000000e-01 : f32
    %288 = vector.broadcast %cst_134 : f32 to vector<8x128xf32>
    %289 = arith.cmpf ogt, %287, %288 : vector<8x128xf32>
    %290 = arith.select %289, %264, %4 : vector<8x128xi1>, vector<8x128xf32>
    %cst_135 = arith.constant dense<0.000000e+00> : vector<128xf32>
    %291 = vector.multi_reduction <add>, %290, %cst_135 [0] : vector<8x128xf32> to vector<128xf32>
    %292 = vector.shape_cast %291 : vector<128xf32> to vector<1x128xf32>
    %c1_136 = arith.constant 1 : index
    %c0_137 = arith.constant 0 : index
    %c5_138 = arith.constant 5 : index
    %c0_139 = arith.constant 0 : index
    %c0_140 = arith.constant 0 : index
    %293 = vector.load %arg4[%c1_136, %c0_137, %c5_138, %c0_139, %c0_140] : memref<2x1x8x8x128xf32, #tpu.memory_space<vmem>>, vector<1x1x1x8x128xf32>
    %294 = vector.shape_cast %293 : vector<1x1x1x8x128xf32> to vector<8x128xf32>
    %cst_141 = arith.constant 5.000000e-01 : f32
    %295 = vector.broadcast %cst_141 : f32 to vector<8x128xf32>
    %296 = arith.cmpf ogt, %294, %295 : vector<8x128xf32>
    %297 = arith.select %296, %264, %4 : vector<8x128xi1>, vector<8x128xf32>
    %cst_142 = arith.constant dense<0.000000e+00> : vector<128xf32>
    %298 = vector.multi_reduction <add>, %297, %cst_142 [0] : vector<8x128xf32> to vector<128xf32>
    %299 = vector.shape_cast %298 : vector<128xf32> to vector<1x128xf32>
    %c1_143 = arith.constant 1 : index
    %c0_144 = arith.constant 0 : index
    %c6_145 = arith.constant 6 : index
    %c0_146 = arith.constant 0 : index
    %c0_147 = arith.constant 0 : index
    %300 = vector.load %arg4[%c1_143, %c0_144, %c6_145, %c0_146, %c0_147] : memref<2x1x8x8x128xf32, #tpu.memory_space<vmem>>, vector<1x1x1x8x128xf32>
    %301 = vector.shape_cast %300 : vector<1x1x1x8x128xf32> to vector<8x128xf32>
    %cst_148 = arith.constant 5.000000e-01 : f32
    %302 = vector.broadcast %cst_148 : f32 to vector<8x128xf32>
    %303 = arith.cmpf ogt, %301, %302 : vector<8x128xf32>
    %304 = arith.select %303, %260, %4 : vector<8x128xi1>, vector<8x128xf32>
    %cst_149 = arith.constant dense<0.000000e+00> : vector<128xf32>
    %305 = vector.multi_reduction <add>, %304, %cst_149 [0] : vector<8x128xf32> to vector<128xf32>
    %306 = vector.shape_cast %305 : vector<128xf32> to vector<1x128xf32>
    %c1_150 = arith.constant 1 : index
    %c0_151 = arith.constant 0 : index
    %c7_152 = arith.constant 7 : index
    %c0_153 = arith.constant 0 : index
    %c0_154 = arith.constant 0 : index
    %307 = vector.load %arg4[%c1_150, %c0_151, %c7_152, %c0_153, %c0_154] : memref<2x1x8x8x128xf32, #tpu.memory_space<vmem>>, vector<1x1x1x8x128xf32>
    %308 = vector.shape_cast %307 : vector<1x1x1x8x128xf32> to vector<8x128xf32>
    %cst_155 = arith.constant 5.000000e-01 : f32
    %309 = vector.broadcast %cst_155 : f32 to vector<8x128xf32>
    %310 = arith.cmpf ogt, %308, %309 : vector<8x128xf32>
    %311 = arith.select %310, %262, %4 : vector<8x128xi1>, vector<8x128xf32>
    %cst_156 = arith.constant dense<0.000000e+00> : vector<128xf32>
    %312 = vector.multi_reduction <add>, %311, %cst_156 [0] : vector<8x128xf32> to vector<128xf32>
    %313 = vector.shape_cast %312 : vector<128xf32> to vector<1x128xf32>
    %cst_157 = arith.constant 0.000000e+00 : f32
    %314 = vector.broadcast %cst_157 : f32 to vector<1x128xf32>
    %315 = tpu.concatenate %271, %278, %285, %292, %299, %306, %313, %314 in 0 : vector<1x128xf32>, vector<1x128xf32>, vector<1x128xf32>, vector<1x128xf32>, vector<1x128xf32>, vector<1x128xf32>, vector<1x128xf32>, vector<1x128xf32> -> vector<8x128xf32>
    %c1_158 = arith.constant 1 : index
    %c0_159 = arith.constant 0 : index
    %c0_160 = arith.constant 0 : index
    %c0_161 = arith.constant 0 : index
    %316 = vector.load %arg8[%c1_158, %c0_159, %c0_160, %c0_161] : memref<2x1x8x128xf32, #tpu.memory_space<vmem>>, vector<1x1x8x128xf32>
    %317 = vector.shape_cast %316 : vector<1x1x8x128xf32> to vector<8x128xf32>
    %318 = vector.shape_cast %315 : vector<8x128xf32> to vector<1x1x8x128xf32>
    tpu.vector_store %arg8[%c1_158, %c0_159, %c0_160, %c0_161], %318 {strides = array<i32>} : memref<2x1x8x128xf32, #tpu.memory_space<vmem>>, vector<1x1x8x128xf32>,
    return
  }
  func.func @transform_0(%arg0: i32, %arg1: i32) -> i32 {
    %c0_i32 = arith.constant 0 : i32
    %c0_i32_0 = arith.constant 0 : i32
    return %c0_i32 : i32
  }
  func.func @transform_1(%arg0: i32, %arg1: i32) -> (i32, i32, i32) {
    %c0_i32 = arith.constant 0 : i32
    %c0_i32_0 = arith.constant 0 : i32
    %c0_i32_1 = arith.constant 0 : i32
    %c0_i32_2 = arith.constant 0 : i32
    return %c0_i32, %c0_i32_0, %c0_i32_1 : i32, i32, i32
  }
  func.func @transform_2(%arg0: i32, %arg1: i32) -> (i32, i32, i32, i32, i32) {
    %c1_i32 = arith.constant 1 : i32
    %0 = arith.addi %arg1, %c1_i32 : i32
    %c0_i32 = arith.constant 0 : i32
    %c0_i32_0 = arith.constant 0 : i32
    %c0_i32_1 = arith.constant 0 : i32
    %c0_i32_2 = arith.constant 0 : i32
    return %arg0, %0, %c0_i32, %c0_i32_0, %c0_i32_1 : i32, i32, i32, i32, i32
  }
  func.func @transform_3(%arg0: i32, %arg1: i32) -> (i32, i32, i32, i32) {
    %c0_i32 = arith.constant 0 : i32
    %c0_i32_0 = arith.constant 0 : i32
    %c0_i32_1 = arith.constant 0 : i32
    return %arg0, %arg1, %c0_i32, %c0_i32_0 : i32, i32, i32, i32
  }
  func.func @transform_4(%arg0: i32, %arg1: i32) -> (i32, i32, i32, i32) {
    %c0_i32 = arith.constant 0 : i32
    %c0_i32_0 = arith.constant 0 : i32
    %c0_i32_1 = arith.constant 0 : i32
    return %arg0, %arg1, %c0_i32, %c0_i32_0 : i32, i32, i32, i32
  }
  func.func @transform_5(%arg0: i32, %arg1: i32) -> (i32, i32, i32, i32) {
    %c0_i32 = arith.constant 0 : i32
    %c0_i32_0 = arith.constant 0 : i32
    %c0_i32_1 = arith.constant 0 : i32
    return %arg0, %arg1, %c0_i32, %c0_i32_0 : i32, i32, i32, i32
  }
  func.func @transform_6(%arg0: i32, %arg1: i32) -> (i32, i32, i32, i32) {
    %c0_i32 = arith.constant 0 : i32
    %c0_i32_0 = arith.constant 0 : i32
    %c0_i32_1 = arith.constant 0 : i32
    return %arg0, %arg1, %c0_i32, %c0_i32_0 : i32, i32, i32, i32
  }
}

</mosaic_0001>

<llo_original>
// kernel: neg.0
$region0: #{neg.0}
  #allocation0 [shape = 's32[1]{0}', space=sflag, size = 0x4, scoped, tag = 'scoped memory for neg.0']
  %s0 = inlined_call_operand.vmem [shape: f32[2], index: 0, kind: input, shape index: {}]
  %s1 = inlined_call_operand.vmem [shape: f32[2], index: 1, kind: output, shape index: {}]
  %v2 = vld [vmem:[%s0] sm:$0x1]
  %3 = xla_tuple %v2
  %4 = xla_tuple %3
  %v5 = vxor.u32 %v2, 2147483648
  %6 = xla_tuple %v5
  %7 = vst [vmem:[%s1] sm:$0x1] %v5

// kernel: cost_forward.1
$region0: #{cost_forward.1}
  #allocation0 [shape = 'u32[]', space=smem, size = 0x4, offset = 0x4, fixed_abs, tag = 'smem constant byte address 0x4 - core index']
  #allocation1 [shape = 'u32[72,128]{1,0:T(1,128)}', space=vmem, size = 0x9000, scoped, tag = 'internal scratch']
  %s0 = inlined_call_operand.vmem [shape: f32[128], index: 0, kind: input, shape index: {}]
  %s1 = inlined_call_operand.vmem [shape: f32[2,8,128], index: 1, kind: input, shape index: {}]
  %s2 = inlined_call_operand.vmem [shape: f32[2,9,8,8,128], index: 2, kind: input, shape index: {}]
  %s3 = inlined_call_operand.vmem [shape: bf16[2,8,8,128], index: 3, kind: output, shape index: {0}]
  %s4 = inlined_call_operand.vmem [shape: bf16[2,8,8,128], index: 4, kind: output, shape index: {1}]
  %s5 = inlined_call_operand.vmem [shape: bf16[2,8,8,128], index: 5, kind: output, shape index: {2}]
  %s6 = inlined_call_operand.vmem [shape: f32[2,8,8,128], index: 6, kind: output, shape index: {3}]
  %7 = xla_tuple %s3, %s4, %s5, %s6
  %s8 = sld [smem:[#allocation0]]
  $region256: #{cost_forward.1} parent=0
    _
  %s10 = ssub.s32 1, %s8
  %s11 = scalar_select 0, %s10, %s8
  $region1: #{cost_forward.1} parent=0
    #allocation2 [shape = 'u8[512]{0}', space=smem, size = 0x200, scoped, tag = 'input window, operand 0, single buffered']
    #allocation3 [shape = 's32[2]{0}', space=sflag, size = 0x8, scoped, tag = 'scoped memory for cost_forward.1']
    #allocation4 [shape = 'u8[131072]{0}', space=vmem, size = 0x20000, scoped, tag = 'input window, operand 2']
    #allocation5 [shape = 'u8[8192]{0}', space=vmem, size = 0x2000, scoped, tag = 'output window, operand 0']
    #allocation6 [shape = 'u8[8192]{0}', space=vmem, size = 0x2000, scoped, tag = 'output window, operand 1']
    #allocation7 [shape = 'u8[8192]{0}', space=vmem, size = 0x2000, scoped, tag = 'output window, operand 2']
    #allocation8 [shape = 'u8[16384]{0}', space=vmem, size = 0x4000, scoped, tag = 'output window, operand 3']
    %12 = vsyncpa [#allocation3], 0
    loop: start=0, step=1, limit=10
    $region2: #{cost_forward.1} parent=1 // loop_pre_header
      _
    $region3: #{cost_forward.1} parent=1 // loop_header
      %s14 = sphi 0, %s18
      %p15 = scmp.ge.s32.totalorder %s14, 10
      %s21 = sphi 0, %s33
      %s22 = sphi 0, %s29
      %s23 = sphi 0, %s21
      %s24 = sphi 0, %s22
      %s25 = sphi 0, %s23
      %s26 = sphi 0, %s24
      %s34 = sphi 0, %s34
      %s36 = sphi 0, %s34
      %s37 = sphi 0, %s36
      %s51 = sphi 0, %s37
      %s55 = sphi 0, %s55
      %s57 = sphi 0, %s55
      %s58 = sphi 0, %s57
      %s72 = sphi 0, %s58
      %s82 = sphi 0, %s84
      %s85 = sphi 0, %s82
      %s86 = sphi 0, %s85
      %s102 = sphi 0, %s86
      %s110 = sphi 0, %s112
      %s113 = sphi 0, %s110
      %s114 = sphi 0, %s113
      %s130 = sphi 0, %s114
      %s138 = sphi 0, %s140
      %s141 = sphi 0, %s138
      %s142 = sphi 0, %s141
      %s158 = sphi 0, %s142
      %s166 = sphi 0, %s168
      %s169 = sphi 0, %s166
      %s170 = sphi 0, %s169
      %s186 = sphi 0, %s170
      %s194 = sphi 0, %s196
      %s197 = sphi 0, %s194
      %s198 = sphi 0, %s197
      %s214 = sphi 0, %s198
    $region4: #{cost_forward.1} parent=1 // loop_header_branch
      %17 = sbr.rel (%p15) target = $region8
    $region5: #{cost_forward.1} parent=1 // loop_body
      %s19 = ssub.s32 %s14, 1
      %s20 = ssub.s32 %s14, 2
      %s27 = sadd.s32 1, %s22
      %p28 = scmp.ge.s32.totalorder %s27, 8
      %s29 = scalar_select %p28, 0, %s27
      %s30 = sadd.s32 1, %s21
      %s31 = scalar_select %p28, %s30, %s21
      %p32 = scmp.ge.s32.totalorder %s31, 1
      %s33 = scalar_select %p32, 0, %s31
      %s35 = sadd.s32 %s34, 1
      %p38 = scmp.eq.s32.totalorder %s14, 7
      %p39 = scmp.ne.s32.totalorder %s34, %s36
      %p40 = scmp.eq.s32.totalorder %s14, 0
      %p41 = por %p39, %p40
      %p42 = scmp.ne.s32.totalorder %s34, %s36
      %p43 = scmp.eq.s32.totalorder %s19, 7
      %p44 = por %p42, %p43
      %p45 = scmp.ne.s32.totalorder %s36, %s37
      %p46 = scmp.eq.s32.totalorder %s19, 0
      %p47 = por %p45, %p46
      %p48 = scmp.ne.s32.totalorder %s36, %s37
      %p49 = scmp.eq.s32.totalorder %s20, 7
      %p50 = por %p48, %p49
      %p52 = scmp.ne.s32.totalorder %s37, %s51
      %p53 = scmp.eq.s32.totalorder %s20, 0
      %p54 = por %p52, %p53
      %s56 = sadd.s32 %s55, 1
      %p59 = scmp.eq.s32.totalorder %s14, 7
      %p60 = scmp.ne.s32.totalorder %s55, %s57
      %p61 = scmp.eq.s32.totalorder %s14, 0
      %p62 = por %p60, %p61
      %p63 = scmp.ne.s32.totalorder %s55, %s57
      %p64 = scmp.eq.s32.totalorder %s19, 7
      %p65 = por %p63, %p64
      %p66 = scmp.ne.s32.totalorder %s57, %s58
      %p67 = scmp.eq.s32.totalorder %s19, 0
      %p68 = por %p66, %p67
      %p69 = scmp.ne.s32.totalorder %s57, %s58
      %p70 = scmp.eq.s32.totalorder %s20, 7
      %p71 = por %p69, %p70
      %p73 = scmp.ne.s32.totalorder %s58, %s72
      %p74 = scmp.eq.s32.totalorder %s20, 0
      %p75 = por %p73, %p74
      %s76 = sadd.s32 %s22, 1
      %s77 = sadd.s32 %s29, 1
      %s78 = ssub.s32 %s21, %s33
      %s79 = ssub.s32 %s76, %s77
      %s80 = sor.u32 %s78, %s79
      %p81 = scmp.eq.s32.totalorder %s80, 0
      %s83 = sadd.s32 %s82, 1
      %s84 = scalar_select %p81, %s82, %s83
      %p87 = pneg %p81
      %p88 = scmp.eq.s32.totalorder %s14, 7
      %p89 = por %p87, %p88
      %p90 = scmp.ne.s32.totalorder %s82, %s85
      %p91 = scmp.eq.s32.totalorder %s14, 0
      %p92 = por %p90, %p91
      %p93 = scmp.ne.s32.totalorder %s82, %s85
      %p94 = scmp.eq.s32.totalorder %s19, 7
      %p95 = por %p93, %p94
      %p96 = scmp.ne.s32.totalorder %s85, %s86
      %p97 = scmp.eq.s32.totalorder %s19, 0
      %p98 = por %p96, %p97
      %p99 = scmp.ne.s32.totalorder %s85, %s86
      %p100 = scmp.eq.s32.totalorder %s20, 7
      %p101 = por %p99, %p100
      %p103 = scmp.ne.s32.totalorder %s86, %s102
      %p104 = scmp.eq.s32.totalorder %s20, 0
      %p105 = por %p103, %p104
      %s106 = ssub.s32 %s21, %s33
      %s107 = ssub.s32 %s22, %s29
      %s108 = sor.u32 %s106, %s107
      %p109 = scmp.eq.s32.totalorder %s108, 0
      %s111 = sadd.s32 %s110, 1
      %s112 = scalar_select %p109, %s110, %s111
      %p115 = pneg %p109
      %p116 = scmp.eq.s32.totalorder %s14, 7
      %p117 = por %p115, %p116
      %p118 = scmp.ne.s32.totalorder %s110, %s113
      %p119 = scmp.eq.s32.totalorder %s14, 0
      %p120 = por %p118, %p119
      %p121 = scmp.ne.s32.totalorder %s110, %s113
      %p122 = scmp.eq.s32.totalorder %s19, 7
      %p123 = por %p121, %p122
      %p124 = scmp.ne.s32.totalorder %s113, %s114
      %p125 = scmp.eq.s32.totalorder %s19, 0
      %p126 = por %p124, %p125
      %p127 = scmp.ne.s32.totalorder %s113, %s114
      %p128 = scmp.eq.s32.totalorder %s20, 7
      %p129 = por %p127, %p128
      %p131 = scmp.ne.s32.totalorder %s114, %s130
      %p132 = scmp.eq.s32.totalorder %s20, 0
      %p133 = por %p131, %p132
      %s134 = ssub.s32 %s21, %s33
      %s135 = ssub.s32 %s22, %s29
      %s136 = sor.u32 %s134, %s135
      %p137 = scmp.eq.s32.totalorder %s136, 0
      %s139 = sadd.s32 %s138, 1
      %s140 = scalar_select %p137, %s138, %s139
      %p143 = pneg %p137
      %p144 = scmp.eq.s32.totalorder %s14, 7
      %p145 = por %p143, %p144
      %p146 = scmp.ne.s32.totalorder %s138, %s141
      %p147 = scmp.eq.s32.totalorder %s14, 0
      %p148 = por %p146, %p147
      %p149 = scmp.ne.s32.totalorder %s138, %s141
      %p150 = scmp.eq.s32.totalorder %s19, 7
      %p151 = por %p149, %p150
      %p152 = scmp.ne.s32.totalorder %s141, %s142
      %p153 = scmp.eq.s32.totalorder %s19, 0
      %p154 = por %p152, %p153
      %p155 = scmp.ne.s32.totalorder %s141, %s142
      %p156 = scmp.eq.s32.totalorder %s20, 7
      %p157 = por %p155, %p156
      %p159 = scmp.ne.s32.totalorder %s142, %s158
      %p160 = scmp.eq.s32.totalorder %s20, 0
      %p161 = por %p159, %p160
      %s162 = ssub.s32 %s21, %s33
      %s163 = ssub.s32 %s22, %s29
      %s164 = sor.u32 %s162, %s163
      %p165 = scmp.eq.s32.totalorder %s164, 0
      %s167 = sadd.s32 %s166, 1
      %s168 = scalar_select %p165, %s166, %s167
      %p171 = pneg %p165
      %p172 = scmp.eq.s32.totalorder %s14, 7
      %p173 = por %p171, %p172
      %p174 = scmp.ne.s32.totalorder %s166, %s169
      %p175 = scmp.eq.s32.totalorder %s14, 0
      %p176 = por %p174, %p175
      %p177 = scmp.ne.s32.totalorder %s166, %s169
      %p178 = scmp.eq.s32.totalorder %s19, 7
      %p179 = por %p177, %p178
      %p180 = scmp.ne.s32.totalorder %s169, %s170
      %p181 = scmp.eq.s32.totalorder %s19, 0
      %p182 = por %p180, %p181
      %p183 = scmp.ne.s32.totalorder %s169, %s170
      %p184 = scmp.eq.s32.totalorder %s20, 7
      %p185 = por %p183, %p184
      %p187 = scmp.ne.s32.totalorder %s170, %s186
      %p188 = scmp.eq.s32.totalorder %s20, 0
      %p189 = por %p187, %p188
      %s190 = ssub.s32 %s21, %s33
      %s191 = ssub.s32 %s22, %s29
      %s192 = sor.u32 %s190, %s191
      %p193 = scmp.eq.s32.totalorder %s192, 0
      %s195 = sadd.s32 %s194, 1
      %s196 = scalar_select %p193, %s194, %s195
      %p199 = pneg %p193
      %p200 = scmp.eq.s32.totalorder %s14, 7
      %p201 = por %p199, %p200
      %p202 = scmp.ne.s32.totalorder %s194, %s197
      %p203 = scmp.eq.s32.totalorder %s14, 0
      %p204 = por %p202, %p203
      %p205 = scmp.ne.s32.totalorder %s194, %s197
      %p206 = scmp.eq.s32.totalorder %s19, 7
      %p207 = por %p205, %p206
      %p208 = scmp.ne.s32.totalorder %s197, %s198
      %p209 = scmp.eq.s32.totalorder %s19, 0
      %p210 = por %p208, %p209
      %p211 = scmp.ne.s32.totalorder %s197, %s198
      %p212 = scmp.eq.s32.totalorder %s20, 7
      %p213 = por %p211, %p212
      %p215 = scmp.ne.s32.totalorder %s198, %s214
      %p216 = scmp.eq.s32.totalorder %s20, 0
      %p217 = por %p215, %p216
      %p218 = scmp.le.s32.totalorder 1, %s14
      %p219 = scmp.lt.s32.totalorder %s14, 9
      %p220 = pnand %p218, %p219
      %p221 = pneg %p220
      // Predicated region
      $region9: #{cost_forward.1} parent=5 // pred_check
        _
      $region10: #{cost_forward.1} parent=5 // pred_check_branch
        %223 = sbr.rel (%p220) target = $region12
      $region11: #{cost_forward.1} parent=5 // pred_region
        %s224 = ssub.s32 %s14, 1
        // Predicated region
        $region13: #{cost_forward.1} parent=11 // pred_check
          %p225 = pneg %p47
        $region14: #{cost_forward.1} parent=11 // pred_check_branch
          %227 = sbr.rel (%p225) target = $region16
        $region15: #{cost_forward.1} parent=11 // pred_region
          %229 = vsyncadd [#allocation3], 0
          %s231 = sshll.u32 %s0, 4
          %s232 = int_to_ptr.vmem [resolvable:$true] %s231
          %234 = dma.vmem_to_smem %s232, 16, [#allocation2], [#allocation3]
        $region16: #{cost_forward.1} parent=11 // pred_fallthru
          _
        // Predicated region
        $region17: #{cost_forward.1} parent=11 // pred_check
          %p235 = pneg %p68
        $region18: #{cost_forward.1} parent=11 // pred_check_branch
          %237 = sbr.rel (%p235) target = $region20
        $region19: #{cost_forward.1} parent=11 // pred_region
          _
        $region20: #{cost_forward.1} parent=11 // pred_fallthru
          _
      $region12: #{cost_forward.1} parent=5 // pred_fallthru
        _
      %p238 = scmp.lt.s32.totalorder %s14, 8
      // Predicated region
      $region21: #{cost_forward.1} parent=5 // pred_check
        %p239 = pneg %p238
      $region22: #{cost_forward.1} parent=5 // pred_check_branch
        %241 = sbr.rel (%p239) target = $region24
      $region23: #{cost_forward.1} parent=5 // pred_region
        // Predicated region
        $region25: #{cost_forward.1} parent=23 // pred_check
          %p242 = pneg %p92
        $region26: #{cost_forward.1} parent=23 // pred_check_branch
          %244 = sbr.rel (%p242) target = $region28
        $region27: #{cost_forward.1} parent=23 // pred_region
          %s245 = sand.u32 %s82, 1
          %s246 = sand.u32 %s82, 1
          %s247 = smul.addr %s246, 128
          %s248 = scalar_lea.vmem [#allocation4], %s247
          %s249 = sadd.s32 %s22, 1
          %s250 = smul.u32 2, %s21
          %s251 = smul.addr %s249, 8
          %s252 = smul.addr %s250, 72
          %s253 = sadd.s32 %s251, %s252
          %s254 = smul.addr %s253, 8
          %s255 = scalar_lea.vmem %s2, %s254
          // Predicated region
          $region29: #{cost_forward.1} parent=27 // pred_check
            _
          $region30: #{cost_forward.1} parent=27 // pred_check_branch
            %257 = sbr.rel (0) target = $region32
          $region31: #{cost_forward.1} parent=27 // pred_region
            // Predicated region
            $region33: #{cost_forward.1} parent=31 // pred_check
              _
            $region34: #{cost_forward.1} parent=31 // pred_check_branch
              %259 = sbr.rel (0) target = $region36
            $region35: #{cost_forward.1} parent=31 // pred_region
              // Predicated region
              $region48: #{cost_forward.1} parent=35 // pred_check
                _
              $region49: #{cost_forward.1} parent=35 // pred_check_branch
                %305 = sbr.rel (0) target = $region51
              $region50: #{cost_forward.1} parent=35 // pred_region
                loop: start=0, step=1, limit=1
                $region52: #{cost_forward.1} parent=50 // loop_pre_header
                  _
                $region53: #{cost_forward.1} parent=50 // loop_header
                  %s307 = sphi 0, %s311
                  %p308 = scmp.ge.s32.totalorder %s307, 1
                  %s312 = sphi %s255, %s255
                  %s313 = sphi %s248, %s248
                $region54: #{cost_forward.1} parent=50 // loop_header_branch
                  %310 = sbr.rel (%p308) target = $region58
                $region55: #{cost_forward.1} parent=50 // loop_body
                  %v314 = vld [vmem:[%s312] sm:$0xff]
                  %315 = vst [vmem:[%s313] sm:$0xff] %v314
                  %v316 = vld [vmem:[%s312 + $0x8] sm:$0xff]
                  %317 = vst [vmem:[%s313 + $0x8] sm:$0xff] %v316
                  %v318 = vld [vmem:[%s312 + $0x10] sm:$0xff]
                  %319 = vst [vmem:[%s313 + $0x10] sm:$0xff] %v318
                  %v320 = vld [vmem:[%s312 + $0x18] sm:$0xff]
                  %321 = vst [vmem:[%s313 + $0x18] sm:$0xff] %v320
                  %v322 = vld [vmem:[%s312 + $0x20] sm:$0xff]
                  %323 = vst [vmem:[%s313 + $0x20] sm:$0xff] %v322
                  %v324 = vld [vmem:[%s312 + $0x28] sm:$0xff]
                  %325 = vst [vmem:[%s313 + $0x28] sm:$0xff] %v324
                  %v326 = vld [vmem:[%s312 + $0x30] sm:$0xff]
                  %327 = vst [vmem:[%s313 + $0x30] sm:$0xff] %v326
                  %v328 = vld [vmem:[%s312 + $0x38] sm:$0xff]
                  %329 = vst [vmem:[%s313 + $0x38] sm:$0xff] %v328
                  %v330 = vld [vmem:[%s312 + $0x240] sm:$0xff]
                  %331 = vst [vmem:[%s313 + $0x40] sm:$0xff] %v330
                  %v332 = vld [vmem:[%s312 + $0x248] sm:$0xff]
                  %333 = vst [vmem:[%s313 + $0x48] sm:$0xff] %v332
                  %v334 = vld [vmem:[%s312 + $0x250] sm:$0xff]
                  %335 = vst [vmem:[%s313 + $0x50] sm:$0xff] %v334
                  %v336 = vld [vmem:[%s312 + $0x258] sm:$0xff]
                  %337 = vst [vmem:[%s313 + $0x58] sm:$0xff] %v336
                  %v338 = vld [vmem:[%s312 + $0x260] sm:$0xff]
                  %339 = vst [vmem:[%s313 + $0x60] sm:$0xff] %v338
                  %v340 = vld [vmem:[%s312 + $0x268] sm:$0xff]
                  %341 = vst [vmem:[%s313 + $0x68] sm:$0xff] %v340
                  %v342 = vld [vmem:[%s312 + $0x270] sm:$0xff]
                  %343 = vst [vmem:[%s313 + $0x70] sm:$0xff] %v342
                  %v344 = vld [vmem:[%s312 + $0x278] sm:$0xff]
                  %345 = vst [vmem:[%s313 + $0x78] sm:$0xff] %v344
                $region56: #{cost_forward.1} parent=50 // loop_footer
                  %s311 = sadd.s32 1, %s307
                $region57: #{cost_forward.1} parent=50 // loop_footer_branch
                  %306 = sbr.rel target = $region53
                $region58: #{cost_forward.1} parent=50 // loop_exit
                  _
              $region51: #{cost_forward.1} parent=35 // pred_fallthru
                _
              // Predicated region
              $region59: #{cost_forward.1} parent=35 // pred_check
                _
              $region60: #{cost_forward.1} parent=35 // pred_check_branch
                %347 = sbr.rel target = $region62
              $region61: #{cost_forward.1} parent=35 // pred_region
                _
              $region62: #{cost_forward.1} parent=35 // pred_fallthru
                _
            $region36: #{cost_forward.1} parent=31 // pred_fallthru
              _
            // Predicated region
            $region37: #{cost_forward.1} parent=31 // pred_check
              _
            $region38: #{cost_forward.1} parent=31 // pred_check_branch
              %261 = sbr.rel target = $region40
            $region39: #{cost_forward.1} parent=31 // pred_region
              %s263 = ssub.s32 256, 1
              loop: start=0, step=1, limit=1
              $region41: #{cost_forward.1} parent=39 // loop_pre_header
                _
              $region42: #{cost_forward.1} parent=39 // loop_header
                %s265 = sphi 0, %s269
                %p266 = scmp.ge.s32.totalorder %s265, 1
                %s270 = sphi %s255, %s255
                %s271 = sphi %s248, %s248
              $region43: #{cost_forward.1} parent=39 // loop_header_branch
                %268 = sbr.rel (%p266) target = $region47
              $region44: #{cost_forward.1} parent=39 // loop_body
                %v272 = vld [vmem:[%s270] sm:%s263]
                %273 = vst [vmem:[%s271] sm:%s263] %v272
                %v274 = vld [vmem:[%s270 + $0x8] sm:%s263]
                %275 = vst [vmem:[%s271 + $0x8] sm:%s263] %v274
                %v276 = vld [vmem:[%s270 + $0x10] sm:%s263]
                %277 = vst [vmem:[%s271 + $0x10] sm:%s263] %v276
                %v278 = vld [vmem:[%s270 + $0x18] sm:%s263]
                %279 = vst [vmem:[%s271 + $0x18] sm:%s263] %v278
                %v280 = vld [vmem:[%s270 + $0x20] sm:%s263]
                %281 = vst [vmem:[%s271 + $0x20] sm:%s263] %v280
                %v282 = vld [vmem:[%s270 + $0x28] sm:%s263]
                %283 = vst [vmem:[%s271 + $0x28] sm:%s263] %v282
                %v284 = vld [vmem:[%s270 + $0x30] sm:%s263]
                %285 = vst [vmem:[%s271 + $0x30] sm:%s263] %v284
                %v286 = vld [vmem:[%s270 + $0x38] sm:%s263]
                %287 = vst [vmem:[%s271 + $0x38] sm:%s263] %v286
                %v288 = vld [vmem:[%s270 + $0x240] sm:%s263]
                %289 = vst [vmem:[%s271 + $0x40] sm:%s263] %v288
                %v290 = vld [vmem:[%s270 + $0x248] sm:%s263]
                %291 = vst [vmem:[%s271 + $0x48] sm:%s263] %v290
                %v292 = vld [vmem:[%s270 + $0x250] sm:%s263]
                %293 = vst [vmem:[%s271 + $0x50] sm:%s263] %v292
                %v294 = vld [vmem:[%s270 + $0x258] sm:%s263]
                %295 = vst [vmem:[%s271 + $0x58] sm:%s263] %v294
                %v296 = vld [vmem:[%s270 + $0x260] sm:%s263]
                %297 = vst [vmem:[%s271 + $0x60] sm:%s263] %v296
                %v298 = vld [vmem:[%s270 + $0x268] sm:%s263]
                %299 = vst [vmem:[%s271 + $0x68] sm:%s263] %v298
                %v300 = vld [vmem:[%s270 + $0x270] sm:%s263]
                %301 = vst [vmem:[%s271 + $0x70] sm:%s263] %v300
                %v302 = vld [vmem:[%s270 + $0x278] sm:%s263]
                %303 = vst [vmem:[%s271 + $0x78] sm:%s263] %v302
              $region45: #{cost_forward.1} parent=39 // loop_footer
                %s269 = sadd.s32 1, %s265
              $region46: #{cost_forward.1} parent=39 // loop_footer_branch
                %264 = sbr.rel target = $region42
              $region47: #{cost_forward.1} parent=39 // loop_exit
                _
            $region40: #{cost_forward.1} parent=31 // pred_fallthru
              _
          $region32: #{cost_forward.1} parent=27 // pred_fallthru
            _
          %348 = vnop
        $region28: #{cost_forward.1} parent=23 // pred_fallthru
          _
      $region24: #{cost_forward.1} parent=5 // pred_fallthru
        _
      %p349 = scmp.le.s32.totalorder 1, %s14
      %p350 = scmp.lt.s32.totalorder %s14, 9
      %p351 = pnand %p349, %p350
      %p352 = pneg %p351
      // Predicated region
      $region63: #{cost_forward.1} parent=5 // pred_check
        _
      $region64: #{cost_forward.1} parent=5 // pred_check_branch
        %354 = sbr.rel (%p351) target = $region66
      $region65: #{cost_forward.1} parent=5 // pred_region
        %s355 = ssub.s32 %s14, 1
        // Predicated region
        $region67: #{cost_forward.1} parent=65 // pred_check
          %p356 = pneg %p47
        $region68: #{cost_forward.1} parent=65 // pred_check_branch
          %358 = sbr.rel (%p356) target = $region70
        $region69: #{cost_forward.1} parent=65 // pred_region
          %360 = dma.done [#allocation3], 16
        $region70: #{cost_forward.1} parent=65 // pred_fallthru
          _
        %s361 = sand.u32 %s85, 1
        %s362 = sand.u32 %s85, 1
        %s363 = smul.addr %s362, 128
        %s364 = scalar_lea.vmem [#allocation4], %s363
        // Predicated region
        $region71: #{cost_forward.1} parent=65 // pred_check
          %p365 = pneg %p98
        $region72: #{cost_forward.1} parent=65 // pred_check_branch
          %367 = sbr.rel (%p365) target = $region74
        $region73: #{cost_forward.1} parent=65 // pred_region
          _
        $region74: #{cost_forward.1} parent=65 // pred_fallthru
          _
        %368 = sfence
        %p369 = pneg %p47
        %p370 = pneg %p44
        %p371 = pneg %p68
        %p372 = pneg %p65
        %s373 = sand.u32 %s85, 1
        %s374 = sand.u32 %s85, 1
        %s375 = smul.addr %s374, 128
        %s376 = scalar_lea.vmem [#allocation4], %s375
        %p377 = pneg %p98
        %p378 = pneg %p95
        %p379 = pneg %p126
        %p380 = pneg %p123
        %s381 = sand.u32 %s113, 1
        %s382 = sand.u32 %s113, 1
        %s383 = smul.addr %s382, 8
        %s384 = scalar_lea.vmem [#allocation5], %s383
        %p385 = pneg %p154
        %p386 = pneg %p151
        %s387 = sand.u32 %s141, 1
        %s388 = sand.u32 %s141, 1
        %s389 = smul.addr %s388, 8
        %s390 = scalar_lea.vmem [#allocation6], %s389
        %p391 = pneg %p182
        %p392 = pneg %p179
        %s393 = sand.u32 %s169, 1
        %s394 = sand.u32 %s169, 1
        %s395 = smul.addr %s394, 8
        %s396 = scalar_lea.vmem [#allocation7], %s395
        %p397 = pneg %p210
        %p398 = pneg %p207
        %s399 = sand.u32 %s197, 1
        %s400 = sand.u32 %s197, 1
        %s401 = smul.addr %s400, 16
        %s402 = scalar_lea.vmem [#allocation8], %s401
        %s403 = sadd.s32 %s24, 1
        %s404 = smul.u32 2, %s23
        %s405 = smul.u32 2, %s23
        %s406 = smul.u32 2, %s23
        %s407 = smul.u32 2, %s23
        %s408 = smul.u32 2, %s23
        %v409 = vld [vmem:[%s1] sm:$0xff]
        %s410 = scalar_lea.vmem %s1, 8
        %v411 = vld [vmem:[%s410] sm:$0xff]
        %s412 = smul.u32 %s23, 16
        %s413 = sadd.s32 %s412, %s24
        %s414 = smul.u32 %s413, 8
        %s415 = sld [smem:[#allocation2 + %s414]]
        %s416 = sadd.s32 %s414, 1
        %s417 = sld [smem:[#allocation2 + %s416]]
        %s418 = sadd.s32 %s414, 2
        %s419 = sld [smem:[#allocation2 + %s418]]
        %s420 = sadd.s32 %s414, 3
        %s421 = sld [smem:[#allocation2 + %s420]]
        %s422 = sadd.s32 %s414, 4
        %s423 = sld [smem:[#allocation2 + %s422]]
        %s424 = sadd.s32 %s414, 5
        %s425 = sld [smem:[#allocation2 + %s424]]
        %s426 = sadd.s32 %s414, 6
        %s427 = sld [smem:[#allocation2 + %s426]]
        %v428 = vstv %s415
        %v429 = vsub.f32 %v409, %v428
        %v430 = vstv %s417
        %v431 = vsub.f32 %v411, %v430
        %v432 = vstv %s419
        %v433 = vmul.f32 %v432, %v429
        %v434 = vstv %s421
        %v435 = vmul.f32 %v434, %v431
        %v436 = vadd.f32 %v433, %v435
        %s437 = ssub.f32 0.0, %s421
        %v438 = vstv %s437
        %v439 = vmul.f32 %v438, %v429
        %v440 = vmul.f32 %v432, %v431
        %v441 = vadd.f32 %v439, %v440
        %vm442 = vcmp.ge.f32.partialorder %v441, -2.45
        %v443 = vstv %s423
        %vm444 = vcmp.le.f32.partialorder %v441, %v443
        %vm445 = vmand %vm442, %vm444
        %v446 = vand.u32 2147483647, %v436
        %vm447 = vcmp.le.f32.partialorder %v446, 2.05
        %vm448 = vmand %vm447, %vm445
        %vm449 = vcmp.le.f32.partialorder %v446, 2.255
        %vm450 = vmand %vm449, %vm445
        %s451 = sadd.f32 %s415, 12.0
        %v452 = vstv %s451
        %v453 = vsub.f32 %v409, %v452
        %s454 = sadd.f32 %s417, 3.25
        %v455 = vstv %s454
        %v456 = vsub.f32 %v411, %v455
        %v457 = vmul.f32 %v432, %v453
        %v458 = vmul.f32 %v434, %v456
        %v459 = vadd.f32 %v457, %v458
        %v460 = vmul.f32 %v438, %v453
        %v461 = vmul.f32 %v432, %v456
        %v462 = vadd.f32 %v460, %v461
        %v463 = vand.u32 2147483647, %v459
        %vm464 = vcmp.le.f32.partialorder %v463, 3.1
        %vm465 = vcmp.ge.f32.partialorder %v462, -2.45
        %vm466 = vmand %vm464, %vm465
        %v467 = vstv %s425
        %vm468 = vcmp.le.f32.partialorder %v462, %v467
        %vm469 = vmand %vm466, %vm468
        %v470 = vsel %vm448, 1, 0
        %v471 = vcvt.s32.f32 %v470
        %v472 = vpack.c.bf16 %v471, %v471
        %473 = vst [vmem:[%s384] sm:$0xf] %v472
        %v474 = vsel %vm450, 1, 0
        %v475 = vcvt.s32.f32 %v474
        %v476 = vpack.c.bf16 %v475, %v475
        %477 = vst [vmem:[%s390] sm:$0xf] %v476
        %v478 = vsel %vm469, 1, 0
        %v479 = vcvt.s32.f32 %v478
        %v480 = vpack.c.bf16 %v479, %v479
        %481 = vst [vmem:[%s396] sm:$0xf] %v480
        %v482 = vstv %s427
        %v483 = vsel %vm448, %v482, 0.0
        %v484 = vsel %vm450, %v482, 0.0
        %v485 = vsel %vm469, %v482, 0.0
        %s486 = scalar_lea.vmem %s364, 8 [#allocation4]
        %v487 = vld [vmem:[%s486] sm:$0xff]
        %vm488 = vcmp.gt.f32.partialorder %v487, 0.5
        %v489 = vsel %vm488, %v484, 0.0
        %v490 = vrot.slane %v489, 4
        %v491 = vadd.f32 %v489, %v490
        %v492 = vrot.slane %v491, 2
        %v493 = vadd.f32 %v491, %v492
        %v494 = vrot.slane %v493, 1
        %v495 = vadd.f32 %v493, %v494
        %s496 = scalar_lea.vmem %s364, 16 [#allocation4]
        %v497 = vld [vmem:[%s496] sm:$0xff]
        %vm498 = vcmp.gt.f32.partialorder %v497, 0.5
        %v499 = vsel %vm498, %v483, 0.0
        %v500 = vrot.slane %v499, 4
        %v501 = vadd.f32 %v499, %v500
        %v502 = vrot.slane %v501, 2
        %v503 = vadd.f32 %v501, %v502
        %v504 = vrot.slane %v503, 1
        %v505 = vadd.f32 %v503, %v504
        %s506 = scalar_lea.vmem %s364, 24 [#allocation4]
        %v507 = vld [vmem:[%s506] sm:$0xff]
        %vm508 = vcmp.gt.f32.partialorder %v507, 0.5
        %v509 = vsel %vm508, %v485, 0.0
        %v510 = vrot.slane %v509, 4
        %v511 = vadd.f32 %v509, %v510
        %v512 = vrot.slane %v511, 2
        %v513 = vadd.f32 %v511, %v512
        %v514 = vrot.slane %v513, 1
        %v515 = vadd.f32 %v513, %v514
        %s516 = scalar_lea.vmem %s364, 32 [#allocation4]
        %v517 = vld [vmem:[%s516] sm:$0xff]
        %vm518 = vcmp.gt.f32.partialorder %v517, 0.5
        %v519 = vsel %vm518, %v485, 0.0
        %v520 = vrot.slane %v519, 4
        %v521 = vadd.f32 %v519, %v520
        %v522 = vrot.slane %v521, 2
        %v523 = vadd.f32 %v521, %v522
        %v524 = vrot.slane %v523, 1
        %v525 = vadd.f32 %v523, %v524
        %s526 = scalar_lea.vmem %s364, 40 [#allocation4]
        %v527 = vld [vmem:[%s526] sm:$0xff]
        %vm528 = vcmp.gt.f32.partialorder %v527, 0.5
        %v529 = vsel %vm528, %v485, 0.0
        %v530 = vrot.slane %v529, 4
        %v531 = vadd.f32 %v529, %v530
        %v532 = vrot.slane %v531, 2
        %v533 = vadd.f32 %v531, %v532
        %v534 = vrot.slane %v533, 1
        %v535 = vadd.f32 %v533, %v534
        %s536 = scalar_lea.vmem %s364, 48 [#allocation4]
        %v537 = vld [vmem:[%s536] sm:$0xff]
        %vm538 = vcmp.gt.f32.partialorder %v537, 0.5
        %v539 = vsel %vm538, %v483, 0.0
        %v540 = vrot.slane %v539, 4
        %v541 = vadd.f32 %v539, %v540
        %v542 = vrot.slane %v541, 2
        %v543 = vadd.f32 %v541, %v542
        %v544 = vrot.slane %v543, 1
        %v545 = vadd.f32 %v543, %v544
        %s546 = scalar_lea.vmem %s364, 56 [#allocation4]
        %v547 = vld [vmem:[%s546] sm:$0xff]
        %vm548 = vcmp.gt.f32.partialorder %v547, 0.5
        %v549 = vsel %vm548, %v484, 0.0
        %v550 = vrot.slane %v549, 4
        %v551 = vadd.f32 %v549, %v550
        %v552 = vrot.slane %v551, 2
        %v553 = vadd.f32 %v551, %v552
        %v554 = vrot.slane %v553, 1
        %v555 = vadd.f32 %v553, %v554
        %vm556 = vcmask 1040384
        %v557 = vsel %vm556, %v495, %v505
        %vm558 = vcmask 1041408
        %v559 = vsel %vm558, %v557, %v515
        %vm560 = vcmask 1042432
        %v561 = vsel %vm560, %v559, %v525
        %vm562 = vcmask 1043456
        %v563 = vsel %vm562, %v561, %v535
        %vm564 = vcmask 1044480
        %v565 = vsel %vm564, %v563, %v545
        %vm566 = vcmask 1045504
        %v567 = vsel %vm566, %v565, %v555
        %vm568 = vcmask 1046528
        %v569 = vsel %vm568, %v567, 0.0
        %570 = vst [vmem:[%s402] sm:$0xff] %v569
        %s571 = smul.u32 %s23, 2
        %s572 = sadd.s32 %s571, 1
        %s573 = smul.u32 %s572, 8
        %s574 = sadd.s32 %s573, %s24
        %s575 = smul.u32 %s574, 8
        %s576 = sld [smem:[#allocation2 + %s575]]
        %s577 = sadd.s32 %s575, 1
        %s578 = sld [smem:[#allocation2 + %s577]]
        %s579 = sadd.s32 %s575, 2
        %s580 = sld [smem:[#allocation2 + %s579]]
        %s581 = sadd.s32 %s575, 3
        %s582 = sld [smem:[#allocation2 + %s581]]
        %s583 = sadd.s32 %s575, 4
        %s584 = sld [smem:[#allocation2 + %s583]]
        %s585 = sadd.s32 %s575, 5
        %s586 = sld [smem:[#allocation2 + %s585]]
        %s587 = sadd.s32 %s575, 6
        %s588 = sld [smem:[#allocation2 + %s587]]
        %v589 = vstv %s576
        %v590 = vsub.f32 %v409, %v589
        %v591 = vstv %s578
        %v592 = vsub.f32 %v411, %v591
        %v593 = vstv %s580
        %v594 = vmul.f32 %v593, %v590
        %v595 = vstv %s582
        %v596 = vmul.f32 %v595, %v592
        %v597 = vadd.f32 %v594, %v596
        %s598 = ssub.f32 0.0, %s582
        %v599 = vstv %s598
        %v600 = vmul.f32 %v599, %v590
        %v601 = vmul.f32 %v593, %v592
        %v602 = vadd.f32 %v600, %v601
        %vm603 = vcmp.ge.f32.partialorder %v602, -2.45
        %v604 = vstv %s584
        %vm605 = vcmp.le.f32.partialorder %v602, %v604
        %vm606 = vmand %vm603, %vm605
        %v607 = vand.u32 2147483647, %v597
        %vm608 = vcmp.le.f32.partialorder %v607, 2.05
        %vm609 = vmand %vm608, %vm606
        %vm610 = vcmp.le.f32.partialorder %v607, 2.255
        %vm611 = vmand %vm610, %vm606
        %s612 = sadd.f32 %s576, 12.0
        %v613 = vstv %s612
        %v614 = vsub.f32 %v409, %v613
        %s615 = sadd.f32 %s578, 3.25
        %v616 = vstv %s615
        %v617 = vsub.f32 %v411, %v616
        %v618 = vmul.f32 %v593, %v614
        %v619 = vmul.f32 %v595, %v617
        %v620 = vadd.f32 %v618, %v619
        %v621 = vmul.f32 %v599, %v614
        %v622 = vmul.f32 %v593, %v617
        %v623 = vadd.f32 %v621, %v622
        %v624 = vand.u32 2147483647, %v620
        %vm625 = vcmp.le.f32.partialorder %v624, 3.1
        %vm626 = vcmp.ge.f32.partialorder %v623, -2.45
        %vm627 = vmand %vm625, %vm626
        %v628 = vstv %s586
        %vm629 = vcmp.le.f32.partialorder %v623, %v628
        %vm630 = vmand %vm627, %vm629
        %v631 = vsel %vm609, 1, 0
        %v632 = vcvt.s32.f32 %v631
        %v633 = vpack.c.bf16 %v632, %v632
        %s634 = scalar_lea.vmem %s384, 4 [#allocation5]
        %635 = vst [vmem:[%s634] sm:$0xf] %v633
        %v636 = vsel %vm611, 1, 0
        %v637 = vcvt.s32.f32 %v636
        %v638 = vpack.c.bf16 %v637, %v637
        %s639 = scalar_lea.vmem %s390, 4 [#allocation6]
        %640 = vst [vmem:[%s639] sm:$0xf] %v638
        %v641 = vsel %vm630, 1, 0
        %v642 = vcvt.s32.f32 %v641
        %v643 = vpack.c.bf16 %v642, %v642
        %s644 = scalar_lea.vmem %s396, 4 [#allocation7]
        %645 = vst [vmem:[%s644] sm:$0xf] %v643
        %v646 = vstv %s588
        %v647 = vsel %vm609, %v646, 0.0
        %v648 = vsel %vm611, %v646, 0.0
        %v649 = vsel %vm630, %v646, 0.0
        %s650 = scalar_lea.vmem %s364, 72 [#allocation4]
        %v651 = vld [vmem:[%s650] sm:$0xff]
        %vm652 = vcmp.gt.f32.partialorder %v651, 0.5
        %v653 = vsel %vm652, %v648, 0.0
        %v654 = vrot.slane %v653, 4
        %v655 = vadd.f32 %v653, %v654
        %v656 = vrot.slane %v655, 2
        %v657 = vadd.f32 %v655, %v656
        %v658 = vrot.slane %v657, 1
        %v659 = vadd.f32 %v657, %v658
        %s660 = scalar_lea.vmem %s364, 80 [#allocation4]
        %v661 = vld [vmem:[%s660] sm:$0xff]
        %vm662 = vcmp.gt.f32.partialorder %v661, 0.5
        %v663 = vsel %vm662, %v647, 0.0
        %v664 = vrot.slane %v663, 4
        %v665 = vadd.f32 %v663, %v664
        %v666 = vrot.slane %v665, 2
        %v667 = vadd.f32 %v665, %v666
        %v668 = vrot.slane %v667, 1
        %v669 = vadd.f32 %v667, %v668
        %s670 = scalar_lea.vmem %s364, 88 [#allocation4]
        %v671 = vld [vmem:[%s670] sm:$0xff]
        %vm672 = vcmp.gt.f32.partialorder %v671, 0.5
        %v673 = vsel %vm672, %v649, 0.0
        %v674 = vrot.slane %v673, 4
        %v675 = vadd.f32 %v673, %v674
        %v676 = vrot.slane %v675, 2
        %v677 = vadd.f32 %v675, %v676
        %v678 = vrot.slane %v677, 1
        %v679 = vadd.f32 %v677, %v678
        %s680 = scalar_lea.vmem %s364, 96 [#allocation4]
        %v681 = vld [vmem:[%s680] sm:$0xff]
        %vm682 = vcmp.gt.f32.partialorder %v681, 0.5
        %v683 = vsel %vm682, %v649, 0.0
        %v684 = vrot.slane %v683, 4
        %v685 = vadd.f32 %v683, %v684
        %v686 = vrot.slane %v685, 2
        %v687 = vadd.f32 %v685, %v686
        %v688 = vrot.slane %v687, 1
        %v689 = vadd.f32 %v687, %v688
        %s690 = scalar_lea.vmem %s364, 104 [#allocation4]
        %v691 = vld [vmem:[%s690] sm:$0xff]
        %vm692 = vcmp.gt.f32.partialorder %v691, 0.5
        %v693 = vsel %vm692, %v649, 0.0
        %v694 = vrot.slane %v693, 4
        %v695 = vadd.f32 %v693, %v694
        %v696 = vrot.slane %v695, 2
        %v697 = vadd.f32 %v695, %v696
        %v698 = vrot.slane %v697, 1
        %v699 = vadd.f32 %v697, %v698
        %s700 = scalar_lea.vmem %s364, 112 [#allocation4]
        %v701 = vld [vmem:[%s700] sm:$0xff]
        %vm702 = vcmp.gt.f32.partialorder %v701, 0.5
        %v703 = vsel %vm702, %v647, 0.0
        %v704 = vrot.slane %v703, 4
        %v705 = vadd.f32 %v703, %v704
        %v706 = vrot.slane %v705, 2
        %v707 = vadd.f32 %v705, %v706
        %v708 = vrot.slane %v707, 1
        %v709 = vadd.f32 %v707, %v708
        %s710 = scalar_lea.vmem %s364, 120 [#allocation4]
        %v711 = vld [vmem:[%s710] sm:$0xff]
        %vm712 = vcmp.gt.f32.partialorder %v711, 0.5
        %v713 = vsel %vm712, %v648, 0.0
        %v714 = vrot.slane %v713, 4
        %v715 = vadd.f32 %v713, %v714
        %v716 = vrot.slane %v715, 2
        %v717 = vadd.f32 %v715, %v716
        %v718 = vrot.slane %v717, 1
        %v719 = vadd.f32 %v717, %v718
        %v720 = vsel %vm556, %v659, %v669
        %v721 = vsel %vm558, %v720, %v679
        %v722 = vsel %vm560, %v721, %v689
        %v723 = vsel %vm562, %v722, %v699
        %v724 = vsel %vm564, %v723, %v709
        %v725 = vsel %vm566, %v724, %v719
        %v726 = vsel %vm568, %v725, 0.0
        %s727 = scalar_lea.vmem %s402, 8 [#allocation8]
        %728 = vst [vmem:[%s727] sm:$0xff] %v726
        %s729 = sand.u32 %s113, 1
        %s730 = sand.u32 %s113, 1
        %s731 = smul.addr %s730, 8
        %s732 = scalar_lea.vmem [#allocation5], %s731
        %s733 = sand.u32 %s141, 1
        %s734 = sand.u32 %s141, 1
        %s735 = smul.addr %s734, 8
        %s736 = scalar_lea.vmem [#allocation6], %s735
        %s737 = sand.u32 %s169, 1
        %s738 = sand.u32 %s169, 1
        %s739 = smul.addr %s738, 8
        %s740 = scalar_lea.vmem [#allocation7], %s739
        %s741 = sand.u32 %s197, 1
        %s742 = sand.u32 %s197, 1
        %s743 = smul.addr %s742, 16
        %s744 = scalar_lea.vmem [#allocation8], %s743
        // Predicated region
        $region75: #{cost_forward.1} parent=65 // pred_check
          %p745 = pneg %p123
        $region76: #{cost_forward.1} parent=65 // pred_check_branch
          %747 = sbr.rel (%p745) target = $region78
        $region77: #{cost_forward.1} parent=65 // pred_region
          %s748 = smul.u32 2, %s23
          %s749 = smul.addr %s748, 8
          %s750 = sadd.s32 %s24, %s749
          %s751 = smul.addr %s750, 4
          %s752 = scalar_lea.vmem %s3, %s751
          // Predicated region
          $region79: #{cost_forward.1} parent=77 // pred_check
            _
          $region80: #{cost_forward.1} parent=77 // pred_check_branch
            %754 = sbr.rel (0) target = $region82
          $region81: #{cost_forward.1} parent=77 // pred_region
            // Predicated region
            $region83: #{cost_forward.1} parent=81 // pred_check
              _
            $region84: #{cost_forward.1} parent=81 // pred_check_branch
              %756 = sbr.rel target = $region86
            $region85: #{cost_forward.1} parent=81 // pred_region
              // Predicated region
              $region98: #{cost_forward.1} parent=85 // pred_check
                _
              $region99: #{cost_forward.1} parent=85 // pred_check_branch
                %774 = sbr.rel (0) target = $region101
              $region100: #{cost_forward.1} parent=85 // pred_region
                loop: start=0, step=1, limit=1
                $region102: #{cost_forward.1} parent=100 // loop_pre_header
                  _
                $region103: #{cost_forward.1} parent=100 // loop_header
                  %s776 = sphi 0, %s780
                  %p777 = scmp.ge.s32.totalorder %s776, 1
                  %s781 = sphi %s732, %s732
                  %s782 = sphi %s752, %s752
                $region104: #{cost_forward.1} parent=100 // loop_header_branch
                  %779 = sbr.rel (%p777) target = $region108
                $region105: #{cost_forward.1} parent=100 // loop_body
                  _
                $region106: #{cost_forward.1} parent=100 // loop_footer
                  %s780 = sadd.s32 1, %s776
                $region107: #{cost_forward.1} parent=100 // loop_footer_branch
                  %775 = sbr.rel target = $region103
                $region108: #{cost_forward.1} parent=100 // loop_exit
                  _
                %s784 = ssub.s32 16, 1
                loop: start=0, step=1, limit=1
                $region109: #{cost_forward.1} parent=100 // loop_pre_header
                  _
                $region110: #{cost_forward.1} parent=100 // loop_header
                  %s786 = sphi 0, %s790
                  %p787 = scmp.ge.s32.totalorder %s786, 1
                  %s791 = sphi %s732, %s732
                  %s792 = sphi %s752, %s752
                $region111: #{cost_forward.1} parent=100 // loop_header_branch
                  %789 = sbr.rel (%p787) target = $region115
                $region112: #{cost_forward.1} parent=100 // loop_body
                  %v793 = vld [vmem:[%s791] sm:%s784]
                  %794 = vst [vmem:[%s792] sm:%s784] %v793
                  %v795 = vld [vmem:[%s791 + $0x4] sm:%s784]
                  %796 = vst [vmem:[%s792 + $0x20] sm:%s784] %v795
                $region113: #{cost_forward.1} parent=100 // loop_footer
                  %s790 = sadd.s32 1, %s786
                $region114: #{cost_forward.1} parent=100 // loop_footer_branch
                  %785 = sbr.rel target = $region110
                $region115: #{cost_forward.1} parent=100 // loop_exit
                  _
              $region101: #{cost_forward.1} parent=85 // pred_fallthru
                _
            $region86: #{cost_forward.1} parent=81 // pred_fallthru
              _
            // Predicated region
            $region87: #{cost_forward.1} parent=81 // pred_check
              _
            $region88: #{cost_forward.1} parent=81 // pred_check_branch
              %758 = sbr.rel (0) target = $region90
            $region89: #{cost_forward.1} parent=81 // pred_region
              %s760 = ssub.s32 16, 1
              loop: start=0, step=1, limit=1
              $region91: #{cost_forward.1} parent=89 // loop_pre_header
                _
              $region92: #{cost_forward.1} parent=89 // loop_header
                %s762 = sphi 0, %s766
                %p763 = scmp.ge.s32.totalorder %s762, 1
                %s767 = sphi %s732, %s732
                %s768 = sphi %s752, %s752
              $region93: #{cost_forward.1} parent=89 // loop_header_branch
                %765 = sbr.rel (%p763) target = $region97
              $region94: #{cost_forward.1} parent=89 // loop_body
                %v769 = vld [vmem:[%s767] sm:%s760]
                %770 = vst [vmem:[%s768] sm:%s760] %v769
                %v771 = vld [vmem:[%s767 + $0x4] sm:%s760]
                %772 = vst [vmem:[%s768 + $0x20] sm:%s760] %v771
              $region95: #{cost_forward.1} parent=89 // loop_footer
                %s766 = sadd.s32 1, %s762
              $region96: #{cost_forward.1} parent=89 // loop_footer_branch
                %761 = sbr.rel target = $region92
              $region97: #{cost_forward.1} parent=89 // loop_exit
                _
            $region90: #{cost_forward.1} parent=81 // pred_fallthru
              _
          $region82: #{cost_forward.1} parent=77 // pred_fallthru
            _
          %797 = vnop
        $region78: #{cost_forward.1} parent=65 // pred_fallthru
          _
        // Predicated region
        $region116: #{cost_forward.1} parent=65 // pred_check
          %p798 = pneg %p151
        $region117: #{cost_forward.1} parent=65 // pred_check_branch
          %800 = sbr.rel (%p798) target = $region119
        $region118: #{cost_forward.1} parent=65 // pred_region
          %s801 = smul.u32 2, %s23
          %s802 = smul.addr %s801, 8
          %s803 = sadd.s32 %s24, %s802
          %s804 = smul.addr %s803, 4
          %s805 = scalar_lea.vmem %s4, %s804
          // Predicated region
          $region120: #{cost_forward.1} parent=118 // pred_check
            _
          $region121: #{cost_forward.1} parent=118 // pred_check_branch
            %807 = sbr.rel (0) target = $region123
          $region122: #{cost_forward.1} parent=118 // pred_region
            // Predicated region
            $region124: #{cost_forward.1} parent=122 // pred_check
              _
            $region125: #{cost_forward.1} parent=122 // pred_check_branch
              %809 = sbr.rel target = $region127
            $region126: #{cost_forward.1} parent=122 // pred_region
              // Predicated region
              $region139: #{cost_forward.1} parent=126 // pred_check
                _
              $region140: #{cost_forward.1} parent=126 // pred_check_branch
                %827 = sbr.rel (0) target = $region142
              $region141: #{cost_forward.1} parent=126 // pred_region
                loop: start=0, step=1, limit=1
                $region143: #{cost_forward.1} parent=141 // loop_pre_header
                  _
                $region144: #{cost_forward.1} parent=141 // loop_header
                  %s829 = sphi 0, %s833
                  %p830 = scmp.ge.s32.totalorder %s829, 1
                  %s834 = sphi %s736, %s736
                  %s835 = sphi %s805, %s805
                $region145: #{cost_forward.1} parent=141 // loop_header_branch
                  %832 = sbr.rel (%p830) target = $region149
                $region146: #{cost_forward.1} parent=141 // loop_body
                  _
                $region147: #{cost_forward.1} parent=141 // loop_footer
                  %s833 = sadd.s32 1, %s829
                $region148: #{cost_forward.1} parent=141 // loop_footer_branch
                  %828 = sbr.rel target = $region144
                $region149: #{cost_forward.1} parent=141 // loop_exit
                  _
                %s837 = ssub.s32 16, 1
                loop: start=0, step=1, limit=1
                $region150: #{cost_forward.1} parent=141 // loop_pre_header
                  _
                $region151: #{cost_forward.1} parent=141 // loop_header
                  %s839 = sphi 0, %s843
                  %p840 = scmp.ge.s32.totalorder %s839, 1
                  %s844 = sphi %s736, %s736
                  %s845 = sphi %s805, %s805
                $region152: #{cost_forward.1} parent=141 // loop_header_branch
                  %842 = sbr.rel (%p840) target = $region156
                $region153: #{cost_forward.1} parent=141 // loop_body
                  %v846 = vld [vmem:[%s844] sm:%s837]
                  %847 = vst [vmem:[%s845] sm:%s837] %v846
                  %v848 = vld [vmem:[%s844 + $0x4] sm:%s837]
                  %849 = vst [vmem:[%s845 + $0x20] sm:%s837] %v848
                $region154: #{cost_forward.1} parent=141 // loop_footer
                  %s843 = sadd.s32 1, %s839
                $region155: #{cost_forward.1} parent=141 // loop_footer_branch
                  %838 = sbr.rel target = $region151
                $region156: #{cost_forward.1} parent=141 // loop_exit
                  _
              $region142: #{cost_forward.1} parent=126 // pred_fallthru
                _
            $region127: #{cost_forward.1} parent=122 // pred_fallthru
              _
            // Predicated region
            $region128: #{cost_forward.1} parent=122 // pred_check
              _
            $region129: #{cost_forward.1} parent=122 // pred_check_branch
              %811 = sbr.rel (0) target = $region131
            $region130: #{cost_forward.1} parent=122 // pred_region
              %s813 = ssub.s32 16, 1
              loop: start=0, step=1, limit=1
              $region132: #{cost_forward.1} parent=130 // loop_pre_header
                _
              $region133: #{cost_forward.1} parent=130 // loop_header
                %s815 = sphi 0, %s819
                %p816 = scmp.ge.s32.totalorder %s815, 1
                %s820 = sphi %s736, %s736
                %s821 = sphi %s805, %s805
              $region134: #{cost_forward.1} parent=130 // loop_header_branch
                %818 = sbr.rel (%p816) target = $region138
              $region135: #{cost_forward.1} parent=130 // loop_body
                %v822 = vld [vmem:[%s820] sm:%s813]
                %823 = vst [vmem:[%s821] sm:%s813] %v822
                %v824 = vld [vmem:[%s820 + $0x4] sm:%s813]
                %825 = vst [vmem:[%s821 + $0x20] sm:%s813] %v824
              $region136: #{cost_forward.1} parent=130 // loop_footer
                %s819 = sadd.s32 1, %s815
              $region137: #{cost_forward.1} parent=130 // loop_footer_branch
                %814 = sbr.rel target = $region133
              $region138: #{cost_forward.1} parent=130 // loop_exit
                _
            $region131: #{cost_forward.1} parent=122 // pred_fallthru
              _
          $region123: #{cost_forward.1} parent=118 // pred_fallthru
            _
          %850 = vnop
        $region119: #{cost_forward.1} parent=65 // pred_fallthru
          _
        // Predicated region
        $region157: #{cost_forward.1} parent=65 // pred_check
          %p851 = pneg %p179
        $region158: #{cost_forward.1} parent=65 // pred_check_branch
          %853 = sbr.rel (%p851) target = $region160
        $region159: #{cost_forward.1} parent=65 // pred_region
          %s854 = smul.u32 2, %s23
          %s855 = smul.addr %s854, 8
          %s856 = sadd.s32 %s24, %s855
          %s857 = smul.addr %s856, 4
          %s858 = scalar_lea.vmem %s5, %s857
          // Predicated region
          $region161: #{cost_forward.1} parent=159 // pred_check
            _
          $region162: #{cost_forward.1} parent=159 // pred_check_branch
            %860 = sbr.rel (0) target = $region164
          $region163: #{cost_forward.1} parent=159 // pred_region
            // Predicated region
            $region165: #{cost_forward.1} parent=163 // pred_check
              _
            $region166: #{cost_forward.1} parent=163 // pred_check_branch
              %862 = sbr.rel target = $region168
            $region167: #{cost_forward.1} parent=163 // pred_region
              // Predicated region
              $region180: #{cost_forward.1} parent=167 // pred_check
                _
              $region181: #{cost_forward.1} parent=167 // pred_check_branch
                %880 = sbr.rel (0) target = $region183
              $region182: #{cost_forward.1} parent=167 // pred_region
                loop: start=0, step=1, limit=1
                $region184: #{cost_forward.1} parent=182 // loop_pre_header
                  _
                $region185: #{cost_forward.1} parent=182 // loop_header
                  %s882 = sphi 0, %s886
                  %p883 = scmp.ge.s32.totalorder %s882, 1
                  %s887 = sphi %s740, %s740
                  %s888 = sphi %s858, %s858
                $region186: #{cost_forward.1} parent=182 // loop_header_branch
                  %885 = sbr.rel (%p883) target = $region190
                $region187: #{cost_forward.1} parent=182 // loop_body
                  _
                $region188: #{cost_forward.1} parent=182 // loop_footer
                  %s886 = sadd.s32 1, %s882
                $region189: #{cost_forward.1} parent=182 // loop_footer_branch
                  %881 = sbr.rel target = $region185
                $region190: #{cost_forward.1} parent=182 // loop_exit
                  _
                %s890 = ssub.s32 16, 1
                loop: start=0, step=1, limit=1
                $region191: #{cost_forward.1} parent=182 // loop_pre_header
                  _
                $region192: #{cost_forward.1} parent=182 // loop_header
                  %s892 = sphi 0, %s896
                  %p893 = scmp.ge.s32.totalorder %s892, 1
                  %s897 = sphi %s740, %s740
                  %s898 = sphi %s858, %s858
                $region193: #{cost_forward.1} parent=182 // loop_header_branch
                  %895 = sbr.rel (%p893) target = $region197
                $region194: #{cost_forward.1} parent=182 // loop_body
                  %v899 = vld [vmem:[%s897] sm:%s890]
                  %900 = vst [vmem:[%s898] sm:%s890] %v899
                  %v901 = vld [vmem:[%s897 + $0x4] sm:%s890]
                  %902 = vst [vmem:[%s898 + $0x20] sm:%s890] %v901
                $region195: #{cost_forward.1} parent=182 // loop_footer
                  %s896 = sadd.s32 1, %s892
                $region196: #{cost_forward.1} parent=182 // loop_footer_branch
                  %891 = sbr.rel target = $region192
                $region197: #{cost_forward.1} parent=182 // loop_exit
                  _
              $region183: #{cost_forward.1} parent=167 // pred_fallthru
                _
            $region168: #{cost_forward.1} parent=163 // pred_fallthru
              _
            // Predicated region
            $region169: #{cost_forward.1} parent=163 // pred_check
              _
            $region170: #{cost_forward.1} parent=163 // pred_check_branch
              %864 = sbr.rel (0) target = $region172
            $region171: #{cost_forward.1} parent=163 // pred_region
              %s866 = ssub.s32 16, 1
              loop: start=0, step=1, limit=1
              $region173: #{cost_forward.1} parent=171 // loop_pre_header
                _
              $region174: #{cost_forward.1} parent=171 // loop_header
                %s868 = sphi 0, %s872
                %p869 = scmp.ge.s32.totalorder %s868, 1
                %s873 = sphi %s740, %s740
                %s874 = sphi %s858, %s858
              $region175: #{cost_forward.1} parent=171 // loop_header_branch
                %871 = sbr.rel (%p869) target = $region179
              $region176: #{cost_forward.1} parent=171 // loop_body
                %v875 = vld [vmem:[%s873] sm:%s866]
                %876 = vst [vmem:[%s874] sm:%s866] %v875
                %v877 = vld [vmem:[%s873 + $0x4] sm:%s866]
                %878 = vst [vmem:[%s874 + $0x20] sm:%s866] %v877
              $region177: #{cost_forward.1} parent=171 // loop_footer
                %s872 = sadd.s32 1, %s868
              $region178: #{cost_forward.1} parent=171 // loop_footer_branch
                %867 = sbr.rel target = $region174
              $region179: #{cost_forward.1} parent=171 // loop_exit
                _
            $region172: #{cost_forward.1} parent=163 // pred_fallthru
              _
          $region164: #{cost_forward.1} parent=159 // pred_fallthru
            _
          %903 = vnop
        $region160: #{cost_forward.1} parent=65 // pred_fallthru
          _
        // Predicated region
        $region198: #{cost_forward.1} parent=65 // pred_check
          %p904 = pneg %p207
        $region199: #{cost_forward.1} parent=65 // pred_check_branch
          %906 = sbr.rel (%p904) target = $region201
        $region200: #{cost_forward.1} parent=65 // pred_region
          %s907 = smul.u32 2, %s23
          %s908 = smul.addr %s907, 8
          %s909 = sadd.s32 %s24, %s908
          %s910 = smul.addr %s909, 8
          %s911 = scalar_lea.vmem %s6, %s910
          // Predicated region
          $region202: #{cost_forward.1} parent=200 // pred_check
            _
          $region203: #{cost_forward.1} parent=200 // pred_check_branch
            %913 = sbr.rel (0) target = $region205
          $region204: #{cost_forward.1} parent=200 // pred_region
            // Predicated region
            $region206: #{cost_forward.1} parent=204 // pred_check
              _
            $region207: #{cost_forward.1} parent=204 // pred_check_branch
              %915 = sbr.rel (0) target = $region209
            $region208: #{cost_forward.1} parent=204 // pred_region
              // Predicated region
              $region221: #{cost_forward.1} parent=208 // pred_check
                _
              $region222: #{cost_forward.1} parent=208 // pred_check_branch
                %933 = sbr.rel (0) target = $region224
              $region223: #{cost_forward.1} parent=208 // pred_region
                loop: start=0, step=1, limit=1
                $region225: #{cost_forward.1} parent=223 // loop_pre_header
                  _
                $region226: #{cost_forward.1} parent=223 // loop_header
                  %s935 = sphi 0, %s939
                  %p936 = scmp.ge.s32.totalorder %s935, 1
                  %s940 = sphi %s744, %s744
                  %s941 = sphi %s911, %s911
                $region227: #{cost_forward.1} parent=223 // loop_header_branch
                  %938 = sbr.rel (%p936) target = $region231
                $region228: #{cost_forward.1} parent=223 // loop_body
                  %v942 = vld [vmem:[%s940] sm:$0xff]
                  %943 = vst [vmem:[%s941] sm:$0xff] %v942
                  %v944 = vld [vmem:[%s940 + $0x8] sm:$0xff]
                  %945 = vst [vmem:[%s941 + $0x40] sm:$0xff] %v944
                $region229: #{cost_forward.1} parent=223 // loop_footer
                  %s939 = sadd.s32 1, %s935
                $region230: #{cost_forward.1} parent=223 // loop_footer_branch
                  %934 = sbr.rel target = $region226
                $region231: #{cost_forward.1} parent=223 // loop_exit
                  _
              $region224: #{cost_forward.1} parent=208 // pred_fallthru
                _
              // Predicated region
              $region232: #{cost_forward.1} parent=208 // pred_check
                _
              $region233: #{cost_forward.1} parent=208 // pred_check_branch
                %947 = sbr.rel target = $region235
              $region234: #{cost_forward.1} parent=208 // pred_region
                _
              $region235: #{cost_forward.1} parent=208 // pred_fallthru
                _
            $region209: #{cost_forward.1} parent=204 // pred_fallthru
              _
            // Predicated region
            $region210: #{cost_forward.1} parent=204 // pred_check
              _
            $region211: #{cost_forward.1} parent=204 // pred_check_branch
              %917 = sbr.rel target = $region213
            $region212: #{cost_forward.1} parent=204 // pred_region
              %s919 = ssub.s32 256, 1
              loop: start=0, step=1, limit=1
              $region214: #{cost_forward.1} parent=212 // loop_pre_header
                _
              $region215: #{cost_forward.1} parent=212 // loop_header
                %s921 = sphi 0, %s925
                %p922 = scmp.ge.s32.totalorder %s921, 1
                %s926 = sphi %s744, %s744
                %s927 = sphi %s911, %s911
              $region216: #{cost_forward.1} parent=212 // loop_header_branch
                %924 = sbr.rel (%p922) target = $region220
              $region217: #{cost_forward.1} parent=212 // loop_body
                %v928 = vld [vmem:[%s926] sm:%s919]
                %929 = vst [vmem:[%s927] sm:%s919] %v928
                %v930 = vld [vmem:[%s926 + $0x8] sm:%s919]
                %931 = vst [vmem:[%s927 + $0x40] sm:%s919] %v930
              $region218: #{cost_forward.1} parent=212 // loop_footer
                %s925 = sadd.s32 1, %s921
              $region219: #{cost_forward.1} parent=212 // loop_footer_branch
                %920 = sbr.rel target = $region215
              $region220: #{cost_forward.1} parent=212 // loop_exit
                _
            $region213: #{cost_forward.1} parent=204 // pred_fallthru
              _
          $region205: #{cost_forward.1} parent=200 // pred_fallthru
            _
          %948 = vnop
        $region201: #{cost_forward.1} parent=65 // pred_fallthru
          _
      $region66: #{cost_forward.1} parent=5 // pred_fallthru
        _
      %p949 = scmp.le.s32.totalorder 2, %s14
      // Predicated region
      $region236: #{cost_forward.1} parent=5 // pred_check
        %p950 = pneg %p949
      $region237: #{cost_forward.1} parent=5 // pred_check_branch
        %952 = sbr.rel (%p950) target = $region239
      $region238: #{cost_forward.1} parent=5 // pred_region
        %s953 = ssub.s32 %s14, 2
        // Predicated region
        $region240: #{cost_forward.1} parent=238 // pred_check
          %p954 = pneg %p129
        $region241: #{cost_forward.1} parent=238 // pred_check_branch
          %956 = sbr.rel (%p954) target = $region243
        $region242: #{cost_forward.1} parent=238 // pred_region
          %s957 = sand.u32 %s114, 1
          %s958 = sand.u32 %s114, 1
          %s959 = smul.addr %s958, 8
          %s960 = scalar_lea.vmem [#allocation5], %s959
        $region243: #{cost_forward.1} parent=238 // pred_fallthru
          _
        // Predicated region
        $region244: #{cost_forward.1} parent=238 // pred_check
          %p961 = pneg %p157
        $region245: #{cost_forward.1} parent=238 // pred_check_branch
          %963 = sbr.rel (%p961) target = $region247
        $region246: #{cost_forward.1} parent=238 // pred_region
          %s964 = sand.u32 %s142, 1
          %s965 = sand.u32 %s142, 1
          %s966 = smul.addr %s965, 8
          %s967 = scalar_lea.vmem [#allocation6], %s966
        $region247: #{cost_forward.1} parent=238 // pred_fallthru
          _
        // Predicated region
        $region248: #{cost_forward.1} parent=238 // pred_check
          %p968 = pneg %p185
        $region249: #{cost_forward.1} parent=238 // pred_check_branch
          %970 = sbr.rel (%p968) target = $region251
        $region250: #{cost_forward.1} parent=238 // pred_region
          %s971 = sand.u32 %s170, 1
          %s972 = sand.u32 %s170, 1
          %s973 = smul.addr %s972, 8
          %s974 = scalar_lea.vmem [#allocation7], %s973
        $region251: #{cost_forward.1} parent=238 // pred_fallthru
          _
        // Predicated region
        $region252: #{cost_forward.1} parent=238 // pred_check
          %p975 = pneg %p213
        $region253: #{cost_forward.1} parent=238 // pred_check_branch
          %977 = sbr.rel (%p975) target = $region255
        $region254: #{cost_forward.1} parent=238 // pred_region
          %s978 = sand.u32 %s198, 1
          %s979 = sand.u32 %s198, 1
          %s980 = smul.addr %s979, 16
          %s981 = scalar_lea.vmem [#allocation8], %s980
        $region255: #{cost_forward.1} parent=238 // pred_fallthru
          _
      $region239: #{cost_forward.1} parent=5 // pred_fallthru
        _
    $region6: #{cost_forward.1} parent=1 // loop_footer
      %s18 = sadd.s32 1, %s14
    $region7: #{cost_forward.1} parent=1 // loop_footer_branch
      %13 = sbr.rel target = $region3
    $region8: #{cost_forward.1} parent=1 // loop_exit
      _
    %982 = vsyncpa [#allocation3], 1
    %s983 = scalar_lea.sflag [#allocation3], 1
    %984 = vsyncpa %s983, 1

</llo_original>
